<compile_context>
chip_gen: v7x
topology: tpu7x:2x2x1
jax: 0.10.0
libtpu: 0.0.40
codegen_flags: <defaults>
</compile_context>

<pallas_src>
import math
import functools

import jax
import jax.numpy as jnp
from jax import lax
from jax.experimental import pallas as pl
from jax.experimental.pallas import tpu as pltpu


# ---------------------------------------------------------------------------
# VMEM budget estimate (weights double-buffered + activation blocks + scratch).
# ---------------------------------------------------------------------------
def _estimate_vmem_bytes(S, H, I, q_tile):
    bf, f4 = 2, 4
    per_layer_w = (4 * H * H + 2 * H * I) * bf            # bf16 weight matrices
    per_layer_small = (8 * H + I) * f4                    # biases + LN params
    weights = 2 * (per_layer_w + per_layer_small)         # double-buffered
    act_blocks = 2 * (S * H * f4 + q_tile * S * bf + q_tile * H * f4)
    scratch = S * H * f4 + 2 * S * H * bf + q_tile * H * f4
    return weights + act_blocks + scratch


# ---------------------------------------------------------------------------
# Kernel: grid step = (batch b, layer l, query-tile t).
# ---------------------------------------------------------------------------
def _encoder_kernel(x_ref, mask_ref,
                    wq_ref, bq_ref, wk_ref, bk_ref, wv_ref, bv_ref,
                    wo_ref, bo_ref, g1_ref, be1_ref,
                    wi_ref, bi_ref, w2_ref, b2_ref, g2_ref, be2_ref,
                    out_ref,
                    x_s, k_s, v_s, ctx_s,
                    *, num_heads, head_dim, eps, q_tile, hidden_act):
    l = pl.program_id(1)
    t = pl.program_id(2)

    # Load this batch element's hidden states into the carried scratch once.
    @pl.when(jnp.logical_and(l == 0, t == 0))
    def _load_input():
        x_s[...] = x_ref[0].astype(jnp.float32)

    # Once per layer: full-sequence K/V projections (bf16 MXU, fp32 accumulate),
    # stored as bf16 so the attention matmuls run at bf16 MXU rate.
    @pl.when(t == 0)
    def _project_kv():
        xb = x_s[...].astype(jnp.bfloat16)
        k = jnp.dot(xb, wk_ref[0], preferred_element_type=jnp.float32) + bk_ref[0]
        v = jnp.dot(xb, wv_ref[0], preferred_element_type=jnp.float32) + bv_ref[0]
        k_s[...] = k.astype(jnp.bfloat16)
        v_s[...] = v.astype(jnp.bfloat16)

    def layernorm(y, g_ref, b_ref):          # fp32 stats, matches torch LayerNorm
        mean = jnp.mean(y, axis=-1, keepdims=True)
        var = jnp.mean(jnp.square(y - mean), axis=-1, keepdims=True)
        return (y - mean) * lax.rsqrt(var + eps) * g_ref[0] + b_ref[0]

    start = pl.multiple_of(t * q_tile, q_tile)
    x_tile = x_s[pl.ds(start, q_tile), :]                     # (tq, H) fp32

    # --- Self-attention ------------------------------------------------------
    q = jnp.dot(x_tile.astype(jnp.bfloat16), wq_ref[0],
                preferred_element_type=jnp.float32) + bq_ref[0]   # (tq, H) fp32
    q_bf = q.astype(jnp.bfloat16)
    k_all = k_s[...]                                          # (S, H) bf16
    v_all = v_s[...]                                          # (S, H) bf16
    mask_f = mask_ref[0].astype(jnp.float32)                  # (tq, S) fp32
    scale = 1.0 / math.sqrt(head_dim)

    # Each head writes its context slice directly into VMEM scratch: no concat.
    for h in range(num_heads):
        lo = h * head_dim
        hi = lo + head_dim
        qh = q_bf[:, lo:hi]                                   # (tq, hd) bf16
        kh = k_all[:, lo:hi]                                  # (S,  hd) bf16
        vh = v_all[:, lo:hi]                                  # (S,  hd) bf16
        scores = lax.dot_general(qh, kh, (((1,), (1,)), ((), ())),
                                 preferred_element_type=jnp.float32)   # (tq, S)
        scores = scores * scale + mask_f
        m = jnp.max(scores, axis=-1, keepdims=True)
        e = jnp.exp(scores - m)
        denom = jnp.sum(e, axis=-1, keepdims=True)
        probs = e * pl.reciprocal(denom, approx=True)
        # TODO(synk): attention_dropout_prob / hidden_dropout_prob are identity
        # (inference / eval-mode semantics).
        ctx_s[:, lo:hi] = jnp.dot(probs.astype(jnp.bfloat16), vh,
                                  preferred_element_type=jnp.float32)

    attn = jnp.dot(ctx_s[...].astype(jnp.bfloat16), wo_ref[0],
                   preferred_element_type=jnp.float32) + bo_ref[0]
    h1 = layernorm(attn + x_tile, g1_ref, be1_ref)

    # --- Feed-forward --------------------------------------------------------
    inter = jnp.dot(h1.astype(jnp.bfloat16), wi_ref[0],
                    preferred_element_type=jnp.float32) + bi_ref[0]
    if hidden_act == "relu":
        inter = jnp.maximum(inter, 0.0)
    else:
        # TODO(synk): tanh-approximate GELU (EUP) deviates slightly from
        # PyTorch's exact-erf GELU; accepted per perf review.
        inter = jax.nn.gelu(inter, approximate=True)
    ffn = jnp.dot(inter.astype(jnp.bfloat16), w2_ref[0],
                  preferred_element_type=jnp.float32) + b2_ref[0]
    out = layernorm(ffn + h1, g2_ref, be2_ref)

    # Carry this layer's output for the next layer; emit the result tile.
    x_s[pl.ds(start, q_tile), :] = out
    out_ref[0] = out.astype(out_ref.dtype)


# ---------------------------------------------------------------------------
# Wrapper: single pallas_call over (batch, layer, query-tile).
# ---------------------------------------------------------------------------
def graph_trans_encoder(hidden_states, attention_mask, params, *,
                        num_heads, layer_norm_eps, hidden_act="gelu"):
    B, S, H = hidden_states.shape
    L = params["wq"].shape[0]
    I = params["wi"].shape[-1]
    head_dim = H // num_heads
    assert num_heads * head_dim == H

    q_tile = 128 if S % 128 == 0 else S     # S-tiling; fall back to full S
    T = S // q_tile

    mask_bf = attention_mask.astype(jnp.bfloat16)   # additive mask: bf16 is enough

    def w_spec(shape):
        return pl.BlockSpec((1,) + shape, lambda b, l, t: (l, 0, 0))

    in_specs = [
        pl.BlockSpec((1, S, H), lambda b, l, t: (b, 0, 0)),        # hidden_states
        pl.BlockSpec((1, q_tile, S), lambda b, l, t: (b, t, 0)),   # attention_mask
        w_spec((H, H)), w_spec((1, H)),    # wq, bq
        w_spec((H, H)), w_spec((1, H)),    # wk, bk
        w_spec((H, H)), w_spec((1, H)),    # wv, bv
        w_spec((H, H)), w_spec((1, H)),    # wo, bo
        w_spec((1, H)), w_spec((1, H)),    # ln1 gamma, beta
        w_spec((H, I)), w_spec((1, I)),    # wi, bi
        w_spec((I, H)), w_spec((1, H)),    # w2, b2
        w_spec((1, H)), w_spec((1, H)),    # ln2 gamma, beta
    ]

    kernel = functools.partial(
        _encoder_kernel, num_heads=num_heads, head_dim=head_dim,
        eps=layer_norm_eps, q_tile=q_tile, hidden_act=hidden_act)

    est = _estimate_vmem_bytes(S, H, I, q_tile)
    vmem_limit = int(min(max(2 * est, 32 * 2**20), 64 * 2**20))

    return pl.pallas_call(
        kernel,
        out_shape=jax.ShapeDtypeStruct((B, S, H), hidden_states.dtype),
        grid_spec=pltpu.PrefetchScalarGridSpec(
            num_scalar_prefetch=0,
            grid=(B, L, T),
            in_specs=in_specs,
            out_specs=pl.BlockSpec((1, q_tile, H), lambda b, l, t: (b, t, 0)),
            scratch_shapes=[
                pltpu.VMEM((S, H), jnp.float32),        # carried hidden state
                pltpu.VMEM((S, H), jnp.bfloat16),       # K projection
                pltpu.VMEM((S, H), jnp.bfloat16),       # V projection
                pltpu.VMEM((q_tile, H), jnp.float32),   # per-tile head context
            ]),
        compiler_params=pltpu.CompilerParams(
            dimension_semantics=("parallel", "arbitrary", "arbitrary"),
            vmem_limit_bytes=vmem_limit),
    )(hidden_states, mask_bf,
      params["wq"], params["bq"], params["wk"], params["bk"],
      params["wv"], params["bv"], params["wo"], params["bo"],
      params["ln1_g"], params["ln1_b"],
      params["wi"], params["bi"], params["w2"], params["b2"],
      params["ln2_g"], params["ln2_b"])


# ---------------------------------------------------------------------------
# Deterministic parameter construction (synthetic, no checkpoint load).
# Weights stacked over layers as (L, in, out) in bf16; biases / LN params fp32.
# ---------------------------------------------------------------------------
def init_params(key, num_layers, hidden, intermediate):
    L, H, I = num_layers, hidden, intermediate

    def w(k, shape):
        return (0.02 * jax.random.normal(k, shape, jnp.float32)).astype(jnp.bfloat16)

    ks = jax.random.split(key, 6)
    zeros = lambda shape: jnp.zeros(shape, jnp.float32)
    ones = lambda shape: jnp.ones(shape, jnp.float32)
    return {
        "wq": w(ks[0], (L, H, H)), "bq": zeros((L, 1, H)),
        "wk": w(ks[1], (L, H, H)), "bk": zeros((L, 1, H)),
        "wv": w(ks[2], (L, H, H)), "bv": zeros((L, 1, H)),
        "wo": w(ks[3], (L, H, H)), "bo": zeros((L, 1, H)),
        "ln1_g": ones((L, 1, H)), "ln1_b": zeros((L, 1, H)),
        "wi": w(ks[4], (L, H, I)), "bi": zeros((L, 1, I)),
        "w2": w(ks[5], (L, I, H)), "b2": zeros((L, 1, H)),
        "ln2_g": ones((L, 1, H)), "ln2_b": zeros((L, 1, H)),
    }


if __name__ == "__main__":
    # Config (small): 2 layers, hidden=32, intermediate=64, heads=4, gelu act.
    B, S, H, I, NH, NL = 2, 8, 32, 64, 4, 2
    EPS = 1e-12

    key = jax.random.PRNGKey(0)
    k_x, k_m, k_p = jax.random.split(key, 3)

    hidden_states = jax.random.normal(k_x, (B, S, H), jnp.float32)
    # Additive attention mask (B, S, S): 0 = attend, -1e4 = masked.
    mask_bits = jax.random.bernoulli(k_m, p=0.9, shape=(B, S, S))
    attention_mask = jnp.where(mask_bits, 0.0, -1e4).astype(jnp.float32)

    params = init_params(k_p, NL, H, I)

    out = graph_trans_encoder(hidden_states, attention_mask, params,
                              num_heads=NH, layer_norm_eps=EPS,
                              hidden_act="gelu")
    jax.block_until_ready(out)
    assert out.shape == (B, S, H)
    print("KERNEL_OK")
</pallas_src>

<mosaic_0001>
module attributes {stable_mosaic.version = 11 : i64} {
  func.func @_encoder_kernel(%arg0: i32, %arg1: i32, %arg2: i32, %arg3: memref<1x8x32xf32, #tpu.memory_space<vmem>>, %arg4: memref<1x8x8xbf16, #tpu.memory_space<vmem>>, %arg5: memref<1x32x32xbf16, #tpu.memory_space<vmem>>, %arg6: memref<1x1x32xf32, #tpu.memory_space<vmem>>, %arg7: memref<1x32x32xbf16, #tpu.memory_space<vmem>>, %arg8: memref<1x1x32xf32, #tpu.memory_space<vmem>>, %arg9: memref<1x32x32xbf16, #tpu.memory_space<vmem>>, %arg10: memref<1x1x32xf32, #tpu.memory_space<vmem>>, %arg11: memref<1x32x32xbf16, #tpu.memory_space<vmem>>, %arg12: memref<1x1x32xf32, #tpu.memory_space<vmem>>, %arg13: memref<1x1x32xf32, #tpu.memory_space<vmem>>, %arg14: memref<1x1x32xf32, #tpu.memory_space<vmem>>, %arg15: memref<1x32x64xbf16, #tpu.memory_space<vmem>>, %arg16: memref<1x1x64xf32, #tpu.memory_space<vmem>>, %arg17: memref<1x64x32xbf16, #tpu.memory_space<vmem>>, %arg18: memref<1x1x32xf32, #tpu.memory_space<vmem>>, %arg19: memref<1x1x32xf32, #tpu.memory_space<vmem>>, %arg20: memref<1x1x32xf32, #tpu.memory_space<vmem>>, %arg21: memref<1x8x32xf32, #tpu.memory_space<vmem>>, %arg22: memref<8x32xf32, #tpu.memory_space<vmem>>, %arg23: memref<8x32xbf16, #tpu.memory_space<vmem>>, %arg24: memref<8x32xbf16, #tpu.memory_space<vmem>>, %arg25: memref<8x32xf32, #tpu.memory_space<vmem>>) attributes {dimension_semantics = [#tpu.dimension_semantics<parallel>, #tpu.dimension_semantics<arbitrary>, #tpu.dimension_semantics<arbitrary>], iteration_bounds = array<i64: 2, 2, 1>, scalar_prefetch = 0 : i64, scratch_operands = 4 : i64, tpu.core_type = #tpu.core_type<tc>, window_params = [{transform_indices = @transform_0, window_bounds = array<i64: 1, 8, 32>}, {transform_indices = @transform_1, window_bounds = array<i64: 1, 8, 8>}, {transform_indices = @transform_2, window_bounds = array<i64: 1, 32, 32>}, {transform_indices = @transform_3, window_bounds = array<i64: 1, 1, 32>}, {transform_indices = @transform_4, window_bounds = array<i64: 1, 32, 32>}, {transform_indices = @transform_5, window_bounds = array<i64: 1, 1, 32>}, {transform_indices = @transform_6, window_bounds = array<i64: 1, 32, 32>}, {transform_indices = @transform_7, window_bounds = array<i64: 1, 1, 32>}, {transform_indices = @transform_8, window_bounds = array<i64: 1, 32, 32>}, {transform_indices = @transform_9, window_bounds = array<i64: 1, 1, 32>}, {transform_indices = @transform_10, window_bounds = array<i64: 1, 1, 32>}, {transform_indices = @transform_11, window_bounds = array<i64: 1, 1, 32>}, {transform_indices = @transform_12, window_bounds = array<i64: 1, 32, 64>}, {transform_indices = @transform_13, window_bounds = array<i64: 1, 1, 64>}, {transform_indices = @transform_14, window_bounds = array<i64: 1, 64, 32>}, {transform_indices = @transform_15, window_bounds = array<i64: 1, 1, 32>}, {transform_indices = @transform_16, window_bounds = array<i64: 1, 1, 32>}, {transform_indices = @transform_17, window_bounds = array<i64: 1, 1, 32>}, {transform_indices = @transform_18, window_bounds = array<i64: 1, 8, 32>}]} {
    %c0_i32 = arith.constant 0 : i32
    %0 = arith.cmpi eq, %arg1, %c0_i32 : i32
    %c0_i32_0 = arith.constant 0 : i32
    %1 = arith.cmpi eq, %arg2, %c0_i32_0 : i32
    %2 = arith.andi %0, %1 : i1
    %3 = arith.extui %2 : i1 to i32
    %c0_i32_1 = arith.constant 0 : i32
    %4 = arith.cmpi ne, %3, %c0_i32_1 : i32
    scf.if %4 {
      %c0_95 = arith.constant 0 : index
      %c0_96 = arith.constant 0 : index
      %c0_97 = arith.constant 0 : index
      %203 = vector.load %arg3[%c0_95, %c0_96, %c0_97] : memref<1x8x32xf32, #tpu.memory_space<vmem>>, vector<1x8x32xf32>
      %204 = vector.shape_cast %203 : vector<1x8x32xf32> to vector<8x32xf32>
      %c0_98 = arith.constant 0 : index
      %c0_99 = arith.constant 0 : index
      %205 = vector.load %arg22[%c0_98, %c0_99] : memref<8x32xf32, #tpu.memory_space<vmem>>, vector<8x32xf32>
      tpu.vector_store %arg22[%c0_98, %c0_99], %204 {strides = array<i32>} : memref<8x32xf32, #tpu.memory_space<vmem>>, vector<8x32xf32>,
    } else {
    }
    %c0_i32_2 = arith.constant 0 : i32
    %5 = arith.cmpi eq, %arg2, %c0_i32_2 : i32
    %6 = arith.extui %5 : i1 to i32
    %c0_i32_3 = arith.constant 0 : i32
    %7 = arith.cmpi ne, %6, %c0_i32_3 : i32
    scf.if %7 {
      %c0_95 = arith.constant 0 : index
      %c0_96 = arith.constant 0 : index
      %203 = vector.load %arg22[%c0_95, %c0_96] : memref<8x32xf32, #tpu.memory_space<vmem>>, vector<8x32xf32>
      %204 = arith.truncf %203 : vector<8x32xf32> to vector<8x32xbf16>
      %c0_97 = arith.constant 0 : index
      %c0_98 = arith.constant 0 : index
      %c0_99 = arith.constant 0 : index
      %205 = vector.load %arg7[%c0_97, %c0_98, %c0_99] : memref<1x32x32xbf16, #tpu.memory_space<vmem>>, vector<1x32x32xbf16>
      %206 = vector.shape_cast %205 : vector<1x32x32xbf16> to vector<32x32xbf16>
      %cst_100 = arith.constant dense<0.000000e+00> : vector<8x32xf32>
      %207 = tpu.matmul %204, %206, %cst_100 {dimension_numbers = #tpu.dot_dimension_numbers<[1], [0], [0], [1], [0, 0, 1, 1], [], []>} : vector<8x32xbf16>, vector<32x32xbf16>, vector<8x32xf32> -> vector<8x32xf32>
      %c0_101 = arith.constant 0 : index
      %c0_102 = arith.constant 0 : index
      %c0_103 = arith.constant 0 : index
      %208 = vector.load %arg8[%c0_101, %c0_102, %c0_103] : memref<1x1x32xf32, #tpu.memory_space<vmem>>, vector<1x1x32xf32>
      %209 = vector.shape_cast %208 : vector<1x1x32xf32> to vector<1x32xf32>
      %210 = vector.broadcast %209 : vector<1x32xf32> to vector<8x32xf32>
      %211 = arith.addf %207, %210 : vector<8x32xf32>
      %c0_104 = arith.constant 0 : index
      %c0_105 = arith.constant 0 : index
      %c0_106 = arith.constant 0 : index
      %212 = vector.load %arg9[%c0_104, %c0_105, %c0_106] : memref<1x32x32xbf16, #tpu.memory_space<vmem>>, vector<1x32x32xbf16>
      %213 = vector.shape_cast %212 : vector<1x32x32xbf16> to vector<32x32xbf16>
      %cst_107 = arith.constant dense<0.000000e+00> : vector<8x32xf32>
      %214 = tpu.matmul %204, %213, %cst_107 {dimension_numbers = #tpu.dot_dimension_numbers<[1], [0], [0], [1], [0, 0, 1, 1], [], []>} : vector<8x32xbf16>, vector<32x32xbf16>, vector<8x32xf32> -> vector<8x32xf32>
      %c0_108 = arith.constant 0 : index
      %c0_109 = arith.constant 0 : index
      %c0_110 = arith.constant 0 : index
      %215 = vector.load %arg10[%c0_108, %c0_109, %c0_110] : memref<1x1x32xf32, #tpu.memory_space<vmem>>, vector<1x1x32xf32>
      %216 = vector.shape_cast %215 : vector<1x1x32xf32> to vector<1x32xf32>
      %217 = vector.broadcast %216 : vector<1x32xf32> to vector<8x32xf32>
      %218 = arith.addf %214, %217 : vector<8x32xf32>
      %219 = arith.truncf %211 : vector<8x32xf32> to vector<8x32xbf16>
      %c0_111 = arith.constant 0 : index
      %c0_112 = arith.constant 0 : index
      %220 = vector.load %arg23[%c0_111, %c0_112] : memref<8x32xbf16, #tpu.memory_space<vmem>>, vector<8x32xbf16>
      tpu.vector_store %arg23[%c0_111, %c0_112], %219 {strides = array<i32>} : memref<8x32xbf16, #tpu.memory_space<vmem>>, vector<8x32xbf16>,
      %221 = arith.truncf %218 : vector<8x32xf32> to vector<8x32xbf16>
      %c0_113 = arith.constant 0 : index
      %c0_114 = arith.constant 0 : index
      %222 = vector.load %arg24[%c0_113, %c0_114] : memref<8x32xbf16, #tpu.memory_space<vmem>>, vector<8x32xbf16>
      tpu.vector_store %arg24[%c0_113, %c0_114], %221 {strides = array<i32>} : memref<8x32xbf16, #tpu.memory_space<vmem>>, vector<8x32xbf16>,
    } else {
    }
    %c8_i32 = arith.constant 8 : i32
    %8 = arith.muli %arg2, %c8_i32 : i32
    %9 = tpu.assume_multiple %8, 8 : i32
    %10 = arith.index_cast %9 : i32 to index
    %c0 = arith.constant 0 : index
    %11 = vector.load %arg22[%10, %c0] : memref<8x32xf32, #tpu.memory_space<vmem>>, vector<8x32xf32>
    %12 = arith.truncf %11 : vector<8x32xf32> to vector<8x32xbf16>
    %c0_4 = arith.constant 0 : index
    %c0_5 = arith.constant 0 : index
    %c0_6 = arith.constant 0 : index
    %13 = vector.load %arg5[%c0_4, %c0_5, %c0_6] : memref<1x32x32xbf16, #tpu.memory_space<vmem>>, vector<1x32x32xbf16>
    %14 = vector.shape_cast %13 : vector<1x32x32xbf16> to vector<32x32xbf16>
    %cst = arith.constant dense<0.000000e+00> : vector<8x32xf32>
    %15 = tpu.matmul %12, %14, %cst {dimension_numbers = #tpu.dot_dimension_numbers<[1], [0], [0], [1], [0, 0, 1, 1], [], []>} : vector<8x32xbf16>, vector<32x32xbf16>, vector<8x32xf32> -> vector<8x32xf32>
    %c0_7 = arith.constant 0 : index
    %c0_8 = arith.constant 0 : index
    %c0_9 = arith.constant 0 : index
    %16 = vector.load %arg6[%c0_7, %c0_8, %c0_9] : memref<1x1x32xf32, #tpu.memory_space<vmem>>, vector<1x1x32xf32>
    %17 = vector.shape_cast %16 : vector<1x1x32xf32> to vector<1x32xf32>
    %18 = vector.broadcast %17 : vector<1x32xf32> to vector<8x32xf32>
    %19 = arith.addf %15, %18 : vector<8x32xf32>
    %20 = arith.truncf %19 : vector<8x32xf32> to vector<8x32xbf16>
    %c0_10 = arith.constant 0 : index
    %c0_11 = arith.constant 0 : index
    %21 = vector.load %arg23[%c0_10, %c0_11] : memref<8x32xbf16, #tpu.memory_space<vmem>>, vector<8x32xbf16>
    %c0_12 = arith.constant 0 : index
    %c0_13 = arith.constant 0 : index
    %22 = vector.load %arg24[%c0_12, %c0_13] : memref<8x32xbf16, #tpu.memory_space<vmem>>, vector<8x32xbf16>
    %c0_14 = arith.constant 0 : index
    %c0_15 = arith.constant 0 : index
    %c0_16 = arith.constant 0 : index
    %23 = vector.load %arg4[%c0_14, %c0_15, %c0_16] : memref<1x8x8xbf16, #tpu.memory_space<vmem>>, vector<1x8x8xbf16>
    %24 = vector.shape_cast %23 : vector<1x8x8xbf16> to vector<8x8xbf16>
    %25 = arith.extf %24 : vector<8x8xbf16> to vector<8x8xf32>
    %26 = vector.extract_strided_slice %20 {offsets = [0, 0], sizes = [8, 8], strides = [1, 1]} : vector<8x32xbf16> to vector<8x8xbf16>
    %27 = vector.extract_strided_slice %21 {offsets = [0, 0], sizes = [8, 8], strides = [1, 1]} : vector<8x32xbf16> to vector<8x8xbf16>
    %28 = vector.extract_strided_slice %22 {offsets = [0, 0], sizes = [8, 8], strides = [1, 1]} : vector<8x32xbf16> to vector<8x8xbf16>
    %cst_17 = arith.constant dense<0.000000e+00> : vector<8x8xf32>
    %29 = tpu.matmul %26, %27, %cst_17 {dimension_numbers = #tpu.dot_dimension_numbers<[1], [1], [0], [0], [0, 0, 1, 0], [], []>} : vector<8x8xbf16>, vector<8x8xbf16>, vector<8x8xf32> -> vector<8x8xf32>
    %cst_18 = arith.constant 0.353553385 : f32
    %30 = vector.broadcast %cst_18 : f32 to vector<8x8xf32>
    %31 = arith.mulf %29, %30 : vector<8x8xf32>
    %32 = arith.addf %31, %25 : vector<8x8xf32>
    %cst_19 = arith.constant dense<0xFF800000> : vector<8xf32>
    %33 = vector.multi_reduction <maximumf>, %32, %cst_19 [1] : vector<8x8xf32> to vector<8xf32>
    %34 = vector.shape_cast %33 : vector<8xf32> to vector<8x1xf32>
    %35 = vector.broadcast %34 : vector<8x1xf32> to vector<8x8xf32>
    %36 = arith.subf %32, %35 : vector<8x8xf32>
    %37 = math.exp %36 : vector<8x8xf32>
    %cst_20 = arith.constant dense<0.000000e+00> : vector<8xf32>
    %38 = vector.multi_reduction <add>, %37, %cst_20 [1] : vector<8x8xf32> to vector<8xf32>
    %39 = vector.shape_cast %38 : vector<8xf32> to vector<8x1xf32>
    %40 = tpu.reciprocal %39 {approx = true} : vector<8x1xf32> -> vector<8x1xf32>
    %41 = vector.broadcast %40 : vector<8x1xf32> to vector<8x8xf32>
    %42 = arith.mulf %37, %41 : vector<8x8xf32>
    %43 = arith.truncf %42 : vector<8x8xf32> to vector<8x8xbf16>
    %cst_21 = arith.constant dense<0.000000e+00> : vector<8x8xf32>
    %44 = tpu.matmul %43, %28, %cst_21 {dimension_numbers = #tpu.dot_dimension_numbers<[1], [0], [0], [1], [0, 0, 1, 1], [], []>} : vector<8x8xbf16>, vector<8x8xbf16>, vector<8x8xf32> -> vector<8x8xf32>
    %c0_22 = arith.constant 0 : index
    %c0_23 = arith.constant 0 : index
    %45 = vector.load %arg25[%c0_22, %c0_23] : memref<8x32xf32, #tpu.memory_space<vmem>>, vector<8x8xf32>
    tpu.vector_store %arg25[%c0_22, %c0_23], %44 {strides = array<i32>} : memref<8x32xf32, #tpu.memory_space<vmem>>, vector<8x8xf32>,
    %46 = vector.extract_strided_slice %20 {offsets = [0, 8], sizes = [8, 8], strides = [1, 1]} : vector<8x32xbf16> to vector<8x8xbf16>
    %47 = vector.extract_strided_slice %21 {offsets = [0, 8], sizes = [8, 8], strides = [1, 1]} : vector<8x32xbf16> to vector<8x8xbf16>
    %48 = vector.extract_strided_slice %22 {offsets = [0, 8], sizes = [8, 8], strides = [1, 1]} : vector<8x32xbf16> to vector<8x8xbf16>
    %cst_24 = arith.constant dense<0.000000e+00> : vector<8x8xf32>
    %49 = tpu.matmul %46, %47, %cst_24 {dimension_numbers = #tpu.dot_dimension_numbers<[1], [1], [0], [0], [0, 0, 1, 0], [], []>} : vector<8x8xbf16>, vector<8x8xbf16>, vector<8x8xf32> -> vector<8x8xf32>
    %cst_25 = arith.constant 0.353553385 : f32
    %50 = vector.broadcast %cst_25 : f32 to vector<8x8xf32>
    %51 = arith.mulf %49, %50 : vector<8x8xf32>
    %52 = arith.addf %51, %25 : vector<8x8xf32>
    %cst_26 = arith.constant dense<0xFF800000> : vector<8xf32>
    %53 = vector.multi_reduction <maximumf>, %52, %cst_26 [1] : vector<8x8xf32> to vector<8xf32>
    %54 = vector.shape_cast %53 : vector<8xf32> to vector<8x1xf32>
    %55 = vector.broadcast %54 : vector<8x1xf32> to vector<8x8xf32>
    %56 = arith.subf %52, %55 : vector<8x8xf32>
    %57 = math.exp %56 : vector<8x8xf32>
    %cst_27 = arith.constant dense<0.000000e+00> : vector<8xf32>
    %58 = vector.multi_reduction <add>, %57, %cst_27 [1] : vector<8x8xf32> to vector<8xf32>
    %59 = vector.shape_cast %58 : vector<8xf32> to vector<8x1xf32>
    %60 = tpu.reciprocal %59 {approx = true} : vector<8x1xf32> -> vector<8x1xf32>
    %61 = vector.broadcast %60 : vector<8x1xf32> to vector<8x8xf32>
    %62 = arith.mulf %57, %61 : vector<8x8xf32>
    %63 = arith.truncf %62 : vector<8x8xf32> to vector<8x8xbf16>
    %cst_28 = arith.constant dense<0.000000e+00> : vector<8x8xf32>
    %64 = tpu.matmul %63, %48, %cst_28 {dimension_numbers = #tpu.dot_dimension_numbers<[1], [0], [0], [1], [0, 0, 1, 1], [], []>} : vector<8x8xbf16>, vector<8x8xbf16>, vector<8x8xf32> -> vector<8x8xf32>
    %c0_29 = arith.constant 0 : index
    %c8 = arith.constant 8 : index
    %65 = vector.load %arg25[%c0_29, %c8] : memref<8x32xf32, #tpu.memory_space<vmem>>, vector<8x8xf32>
    tpu.vector_store %arg25[%c0_29, %c8], %64 {strides = array<i32>} : memref<8x32xf32, #tpu.memory_space<vmem>>, vector<8x8xf32>,
    %66 = vector.extract_strided_slice %20 {offsets = [0, 16], sizes = [8, 8], strides = [1, 1]} : vector<8x32xbf16> to vector<8x8xbf16>
    %67 = vector.extract_strided_slice %21 {offsets = [0, 16], sizes = [8, 8], strides = [1, 1]} : vector<8x32xbf16> to vector<8x8xbf16>
    %68 = vector.extract_strided_slice %22 {offsets = [0, 16], sizes = [8, 8], strides = [1, 1]} : vector<8x32xbf16> to vector<8x8xbf16>
    %cst_30 = arith.constant dense<0.000000e+00> : vector<8x8xf32>
    %69 = tpu.matmul %66, %67, %cst_30 {dimension_numbers = #tpu.dot_dimension_numbers<[1], [1], [0], [0], [0, 0, 1, 0], [], []>} : vector<8x8xbf16>, vector<8x8xbf16>, vector<8x8xf32> -> vector<8x8xf32>
    %cst_31 = arith.constant 0.353553385 : f32
    %70 = vector.broadcast %cst_31 : f32 to vector<8x8xf32>
    %71 = arith.mulf %69, %70 : vector<8x8xf32>
    %72 = arith.addf %71, %25 : vector<8x8xf32>
    %cst_32 = arith.constant dense<0xFF800000> : vector<8xf32>
    %73 = vector.multi_reduction <maximumf>, %72, %cst_32 [1] : vector<8x8xf32> to vector<8xf32>
    %74 = vector.shape_cast %73 : vector<8xf32> to vector<8x1xf32>
    %75 = vector.broadcast %74 : vector<8x1xf32> to vector<8x8xf32>
    %76 = arith.subf %72, %75 : vector<8x8xf32>
    %77 = math.exp %76 : vector<8x8xf32>
    %cst_33 = arith.constant dense<0.000000e+00> : vector<8xf32>
    %78 = vector.multi_reduction <add>, %77, %cst_33 [1] : vector<8x8xf32> to vector<8xf32>
    %79 = vector.shape_cast %78 : vector<8xf32> to vector<8x1xf32>
    %80 = tpu.reciprocal %79 {approx = true} : vector<8x1xf32> -> vector<8x1xf32>
    %81 = vector.broadcast %80 : vector<8x1xf32> to vector<8x8xf32>
    %82 = arith.mulf %77, %81 : vector<8x8xf32>
    %83 = arith.truncf %82 : vector<8x8xf32> to vector<8x8xbf16>
    %cst_34 = arith.constant dense<0.000000e+00> : vector<8x8xf32>
    %84 = tpu.matmul %83, %68, %cst_34 {dimension_numbers = #tpu.dot_dimension_numbers<[1], [0], [0], [1], [0, 0, 1, 1], [], []>} : vector<8x8xbf16>, vector<8x8xbf16>, vector<8x8xf32> -> vector<8x8xf32>
    %c0_35 = arith.constant 0 : index
    %c16 = arith.constant 16 : index
    %85 = vector.load %arg25[%c0_35, %c16] : memref<8x32xf32, #tpu.memory_space<vmem>>, vector<8x8xf32>
    tpu.vector_store %arg25[%c0_35, %c16], %84 {strides = array<i32>} : memref<8x32xf32, #tpu.memory_space<vmem>>, vector<8x8xf32>,
    %86 = vector.extract_strided_slice %20 {offsets = [0, 24], sizes = [8, 8], strides = [1, 1]} : vector<8x32xbf16> to vector<8x8xbf16>
    %87 = vector.extract_strided_slice %21 {offsets = [0, 24], sizes = [8, 8], strides = [1, 1]} : vector<8x32xbf16> to vector<8x8xbf16>
    %88 = vector.extract_strided_slice %22 {offsets = [0, 24], sizes = [8, 8], strides = [1, 1]} : vector<8x32xbf16> to vector<8x8xbf16>
    %cst_36 = arith.constant dense<0.000000e+00> : vector<8x8xf32>
    %89 = tpu.matmul %86, %87, %cst_36 {dimension_numbers = #tpu.dot_dimension_numbers<[1], [1], [0], [0], [0, 0, 1, 0], [], []>} : vector<8x8xbf16>, vector<8x8xbf16>, vector<8x8xf32> -> vector<8x8xf32>
    %cst_37 = arith.constant 0.353553385 : f32
    %90 = vector.broadcast %cst_37 : f32 to vector<8x8xf32>
    %91 = arith.mulf %89, %90 : vector<8x8xf32>
    %92 = arith.addf %91, %25 : vector<8x8xf32>
    %cst_38 = arith.constant dense<0xFF800000> : vector<8xf32>
    %93 = vector.multi_reduction <maximumf>, %92, %cst_38 [1] : vector<8x8xf32> to vector<8xf32>
    %94 = vector.shape_cast %93 : vector<8xf32> to vector<8x1xf32>
    %95 = vector.broadcast %94 : vector<8x1xf32> to vector<8x8xf32>
    %96 = arith.subf %92, %95 : vector<8x8xf32>
    %97 = math.exp %96 : vector<8x8xf32>
    %cst_39 = arith.constant dense<0.000000e+00> : vector<8xf32>
    %98 = vector.multi_reduction <add>, %97, %cst_39 [1] : vector<8x8xf32> to vector<8xf32>
    %99 = vector.shape_cast %98 : vector<8xf32> to vector<8x1xf32>
    %100 = tpu.reciprocal %99 {approx = true} : vector<8x1xf32> -> vector<8x1xf32>
    %101 = vector.broadcast %100 : vector<8x1xf32> to vector<8x8xf32>
    %102 = arith.mulf %97, %101 : vector<8x8xf32>
    %103 = arith.truncf %102 : vector<8x8xf32> to vector<8x8xbf16>
    %cst_40 = arith.constant dense<0.000000e+00> : vector<8x8xf32>
    %104 = tpu.matmul %103, %88, %cst_40 {dimension_numbers = #tpu.dot_dimension_numbers<[1], [0], [0], [1], [0, 0, 1, 1], [], []>} : vector<8x8xbf16>, vector<8x8xbf16>, vector<8x8xf32> -> vector<8x8xf32>
    %c0_41 = arith.constant 0 : index
    %c24 = arith.constant 24 : index
    %105 = vector.load %arg25[%c0_41, %c24] : memref<8x32xf32, #tpu.memory_space<vmem>>, vector<8x8xf32>
    tpu.vector_store %arg25[%c0_41, %c24], %104 {strides = array<i32>} : memref<8x32xf32, #tpu.memory_space<vmem>>, vector<8x8xf32>,
    %c0_42 = arith.constant 0 : index
    %c0_43 = arith.constant 0 : index
    %106 = vector.load %arg25[%c0_42, %c0_43] : memref<8x32xf32, #tpu.memory_space<vmem>>, vector<8x32xf32>
    %107 = arith.truncf %106 : vector<8x32xf32> to vector<8x32xbf16>
    %c0_44 = arith.constant 0 : index
    %c0_45 = arith.constant 0 : index
    %c0_46 = arith.constant 0 : index
    %108 = vector.load %arg11[%c0_44, %c0_45, %c0_46] : memref<1x32x32xbf16, #tpu.memory_space<vmem>>, vector<1x32x32xbf16>
    %109 = vector.shape_cast %108 : vector<1x32x32xbf16> to vector<32x32xbf16>
    %cst_47 = arith.constant dense<0.000000e+00> : vector<8x32xf32>
    %110 = tpu.matmul %107, %109, %cst_47 {dimension_numbers = #tpu.dot_dimension_numbers<[1], [0], [0], [1], [0, 0, 1, 1], [], []>} : vector<8x32xbf16>, vector<32x32xbf16>, vector<8x32xf32> -> vector<8x32xf32>
    %c0_48 = arith.constant 0 : index
    %c0_49 = arith.constant 0 : index
    %c0_50 = arith.constant 0 : index
    %111 = vector.load %arg12[%c0_48, %c0_49, %c0_50] : memref<1x1x32xf32, #tpu.memory_space<vmem>>, vector<1x1x32xf32>
    %112 = vector.shape_cast %111 : vector<1x1x32xf32> to vector<1x32xf32>
    %113 = vector.broadcast %112 : vector<1x32xf32> to vector<8x32xf32>
    %114 = arith.addf %110, %113 : vector<8x32xf32>
    %115 = arith.addf %114, %11 : vector<8x32xf32>
    %cst_51 = arith.constant dense<0.000000e+00> : vector<8xf32>
    %116 = vector.multi_reduction <add>, %115, %cst_51 [1] : vector<8x32xf32> to vector<8xf32>
    %117 = vector.shape_cast %116 : vector<8xf32> to vector<8x1xf32>
    %cst_52 = arith.constant 3.200000e+01 : f32
    %118 = vector.broadcast %cst_52 : f32 to vector<8x1xf32>
    %119 = arith.divf %117, %118 : vector<8x1xf32>
    %120 = vector.broadcast %119 : vector<8x1xf32> to vector<8x32xf32>
    %121 = arith.subf %115, %120 : vector<8x32xf32>
    %122 = arith.mulf %121, %121 : vector<8x32xf32>
    %cst_53 = arith.constant dense<0.000000e+00> : vector<8xf32>
    %123 = vector.multi_reduction <add>, %122, %cst_53 [1] : vector<8x32xf32> to vector<8xf32>
    %124 = vector.shape_cast %123 : vector<8xf32> to vector<8x1xf32>
    %cst_54 = arith.constant 3.200000e+01 : f32
    %125 = vector.broadcast %cst_54 : f32 to vector<8x1xf32>
    %126 = arith.divf %124, %125 : vector<8x1xf32>
    %127 = vector.broadcast %119 : vector<8x1xf32> to vector<8x32xf32>
    %128 = arith.subf %115, %127 : vector<8x32xf32>
    %cst_55 = arith.constant 9.99999996E-13 : f32
    %129 = vector.broadcast %cst_55 : f32 to vector<8x1xf32>
    %130 = arith.addf %126, %129 : vector<8x1xf32>
    %131 = math.rsqrt %130 : vector<8x1xf32>
    %132 = vector.broadcast %131 : vector<8x1xf32> to vector<8x32xf32>
    %133 = arith.mulf %128, %132 : vector<8x32xf32>
    %c0_56 = arith.constant 0 : index
    %c0_57 = arith.constant 0 : index
    %c0_58 = arith.constant 0 : index
    %134 = vector.load %arg13[%c0_56, %c0_57, %c0_58] : memref<1x1x32xf32, #tpu.memory_space<vmem>>, vector<1x1x32xf32>
    %135 = vector.shape_cast %134 : vector<1x1x32xf32> to vector<1x32xf32>
    %136 = vector.broadcast %135 : vector<1x32xf32> to vector<8x32xf32>
    %137 = arith.mulf %133, %136 : vector<8x32xf32>
    %c0_59 = arith.constant 0 : index
    %c0_60 = arith.constant 0 : index
    %c0_61 = arith.constant 0 : index
    %138 = vector.load %arg14[%c0_59, %c0_60, %c0_61] : memref<1x1x32xf32, #tpu.memory_space<vmem>>, vector<1x1x32xf32>
    %139 = vector.shape_cast %138 : vector<1x1x32xf32> to vector<1x32xf32>
    %140 = vector.broadcast %139 : vector<1x32xf32> to vector<8x32xf32>
    %141 = arith.addf %137, %140 : vector<8x32xf32>
    %142 = arith.truncf %141 : vector<8x32xf32> to vector<8x32xbf16>
    %c0_62 = arith.constant 0 : index
    %c0_63 = arith.constant 0 : index
    %c0_64 = arith.constant 0 : index
    %143 = vector.load %arg15[%c0_62, %c0_63, %c0_64] : memref<1x32x64xbf16, #tpu.memory_space<vmem>>, vector<1x32x64xbf16>
    %144 = vector.shape_cast %143 : vector<1x32x64xbf16> to vector<32x64xbf16>
    %cst_65 = arith.constant dense<0.000000e+00> : vector<8x64xf32>
    %145 = tpu.matmul %142, %144, %cst_65 {dimension_numbers = #tpu.dot_dimension_numbers<[1], [0], [0], [1], [0, 0, 1, 1], [], []>} : vector<8x32xbf16>, vector<32x64xbf16>, vector<8x64xf32> -> vector<8x64xf32>
    %c0_66 = arith.constant 0 : index
    %c0_67 = arith.constant 0 : index
    %c0_68 = arith.constant 0 : index
    %146 = vector.load %arg16[%c0_66, %c0_67, %c0_68] : memref<1x1x64xf32, #tpu.memory_space<vmem>>, vector<1x1x64xf32>
    %147 = vector.shape_cast %146 : vector<1x1x64xf32> to vector<1x64xf32>
    %148 = vector.broadcast %147 : vector<1x64xf32> to vector<8x64xf32>
    %149 = arith.addf %145, %148 : vector<8x64xf32>
    %150 = arith.mulf %149, %149 : vector<8x64xf32>
    %151 = arith.mulf %149, %150 : vector<8x64xf32>
    %cst_69 = arith.constant 4.471500e-02 : f32
    %152 = vector.broadcast %cst_69 : f32 to vector<8x64xf32>
    %153 = arith.mulf %152, %151 : vector<8x64xf32>
    %154 = arith.addf %149, %153 : vector<8x64xf32>
    %cst_70 = arith.constant 0.797884583 : f32
    %155 = vector.broadcast %cst_70 : f32 to vector<8x64xf32>
    %156 = arith.mulf %155, %154 : vector<8x64xf32>
    %157 = math.tanh %156 : vector<8x64xf32>
    %cst_71 = arith.constant 1.000000e+00 : f32
    %158 = vector.broadcast %cst_71 : f32 to vector<8x64xf32>
    %159 = arith.addf %158, %157 : vector<8x64xf32>
    %cst_72 = arith.constant 5.000000e-01 : f32
    %160 = vector.broadcast %cst_72 : f32 to vector<8x64xf32>
    %161 = arith.mulf %160, %159 : vector<8x64xf32>
    %162 = arith.mulf %149, %161 : vector<8x64xf32>
    %163 = arith.truncf %162 : vector<8x64xf32> to vector<8x64xbf16>
    %c0_73 = arith.constant 0 : index
    %c0_74 = arith.constant 0 : index
    %c0_75 = arith.constant 0 : index
    %164 = vector.load %arg17[%c0_73, %c0_74, %c0_75] : memref<1x64x32xbf16, #tpu.memory_space<vmem>>, vector<1x64x32xbf16>
    %165 = vector.shape_cast %164 : vector<1x64x32xbf16> to vector<64x32xbf16>
    %cst_76 = arith.constant dense<0.000000e+00> : vector<8x32xf32>
    %166 = tpu.matmul %163, %165, %cst_76 {dimension_numbers = #tpu.dot_dimension_numbers<[1], [0], [0], [1], [0, 0, 1, 1], [], []>} : vector<8x64xbf16>, vector<64x32xbf16>, vector<8x32xf32> -> vector<8x32xf32>
    %c0_77 = arith.constant 0 : index
    %c0_78 = arith.constant 0 : index
    %c0_79 = arith.constant 0 : index
    %167 = vector.load %arg18[%c0_77, %c0_78, %c0_79] : memref<1x1x32xf32, #tpu.memory_space<vmem>>, vector<1x1x32xf32>
    %168 = vector.shape_cast %167 : vector<1x1x32xf32> to vector<1x32xf32>
    %169 = vector.broadcast %168 : vector<1x32xf32> to vector<8x32xf32>
    %170 = arith.addf %166, %169 : vector<8x32xf32>
    %171 = arith.addf %170, %141 : vector<8x32xf32>
    %cst_80 = arith.constant dense<0.000000e+00> : vector<8xf32>
    %172 = vector.multi_reduction <add>, %171, %cst_80 [1] : vector<8x32xf32> to vector<8xf32>
    %173 = vector.shape_cast %172 : vector<8xf32> to vector<8x1xf32>
    %cst_81 = arith.constant 3.200000e+01 : f32
    %174 = vector.broadcast %cst_81 : f32 to vector<8x1xf32>
    %175 = arith.divf %173, %174 : vector<8x1xf32>
    %176 = vector.broadcast %175 : vector<8x1xf32> to vector<8x32xf32>
    %177 = arith.subf %171, %176 : vector<8x32xf32>
    %178 = arith.mulf %177, %177 : vector<8x32xf32>
    %cst_82 = arith.constant dense<0.000000e+00> : vector<8xf32>
    %179 = vector.multi_reduction <add>, %178, %cst_82 [1] : vector<8x32xf32> to vector<8xf32>
    %180 = vector.shape_cast %179 : vector<8xf32> to vector<8x1xf32>
    %cst_83 = arith.constant 3.200000e+01 : f32
    %181 = vector.broadcast %cst_83 : f32 to vector<8x1xf32>
    %182 = arith.divf %180, %181 : vector<8x1xf32>
    %183 = vector.broadcast %175 : vector<8x1xf32> to vector<8x32xf32>
    %184 = arith.subf %171, %183 : vector<8x32xf32>
    %cst_84 = arith.constant 9.99999996E-13 : f32
    %185 = vector.broadcast %cst_84 : f32 to vector<8x1xf32>
    %186 = arith.addf %182, %185 : vector<8x1xf32>
    %187 = math.rsqrt %186 : vector<8x1xf32>
    %188 = vector.broadcast %187 : vector<8x1xf32> to vector<8x32xf32>
    %189 = arith.mulf %184, %188 : vector<8x32xf32>
    %c0_85 = arith.constant 0 : index
    %c0_86 = arith.constant 0 : index
    %c0_87 = arith.constant 0 : index
    %190 = vector.load %arg19[%c0_85, %c0_86, %c0_87] : memref<1x1x32xf32, #tpu.memory_space<vmem>>, vector<1x1x32xf32>
    %191 = vector.shape_cast %190 : vector<1x1x32xf32> to vector<1x32xf32>
    %192 = vector.broadcast %191 : vector<1x32xf32> to vector<8x32xf32>
    %193 = arith.mulf %189, %192 : vector<8x32xf32>
    %c0_88 = arith.constant 0 : index
    %c0_89 = arith.constant 0 : index
    %c0_90 = arith.constant 0 : index
    %194 = vector.load %arg20[%c0_88, %c0_89, %c0_90] : memref<1x1x32xf32, #tpu.memory_space<vmem>>, vector<1x1x32xf32>
    %195 = vector.shape_cast %194 : vector<1x1x32xf32> to vector<1x32xf32>
    %196 = vector.broadcast %195 : vector<1x32xf32> to vector<8x32xf32>
    %197 = arith.addf %193, %196 : vector<8x32xf32>
    %198 = arith.index_cast %9 : i32 to index
    %c0_91 = arith.constant 0 : index
    %199 = vector.load %arg22[%198, %c0_91] : memref<8x32xf32, #tpu.memory_space<vmem>>, vector<8x32xf32>
    tpu.vector_store %arg22[%198, %c0_91], %197 {strides = array<i32>} : memref<8x32xf32, #tpu.memory_space<vmem>>, vector<8x32xf32>,
    %c0_92 = arith.constant 0 : index
    %c0_93 = arith.constant 0 : index
    %c0_94 = arith.constant 0 : index
    %200 = vector.load %arg21[%c0_92, %c0_93, %c0_94] : memref<1x8x32xf32, #tpu.memory_space<vmem>>, vector<1x8x32xf32>
    %201 = vector.shape_cast %200 : vector<1x8x32xf32> to vector<8x32xf32>
    %202 = vector.shape_cast %197 : vector<8x32xf32> to vector<1x8x32xf32>
    tpu.vector_store %arg21[%c0_92, %c0_93, %c0_94], %202 {strides = array<i32>} : memref<1x8x32xf32, #tpu.memory_space<vmem>>, vector<1x8x32xf32>,
    return
  }
  func.func @transform_0(%arg0: i32, %arg1: i32, %arg2: i32) -> (i32, i32, i32) {
    %c0_i32 = arith.constant 0 : i32
    %c0_i32_0 = arith.constant 0 : i32
    %c0_i32_1 = arith.constant 0 : i32
    return %arg0, %c0_i32, %c0_i32_0 : i32, i32, i32
  }
  func.func @transform_1(%arg0: i32, %arg1: i32, %arg2: i32) -> (i32, i32, i32) {
    %c0_i32 = arith.constant 0 : i32
    %c0_i32_0 = arith.constant 0 : i32
    return %arg0, %arg2, %c0_i32 : i32, i32, i32
  }
  func.func @transform_2(%arg0: i32, %arg1: i32, %arg2: i32) -> (i32, i32, i32) {
    %c0_i32 = arith.constant 0 : i32
    %c0_i32_0 = arith.constant 0 : i32
    %c0_i32_1 = arith.constant 0 : i32
    return %arg1, %c0_i32, %c0_i32_0 : i32, i32, i32
  }
  func.func @transform_3(%arg0: i32, %arg1: i32, %arg2: i32) -> (i32, i32, i32) {
    %c0_i32 = arith.constant 0 : i32
    %c0_i32_0 = arith.constant 0 : i32
    %c0_i32_1 = arith.constant 0 : i32
    return %arg1, %c0_i32, %c0_i32_0 : i32, i32, i32
  }
  func.func @transform_4(%arg0: i32, %arg1: i32, %arg2: i32) -> (i32, i32, i32) {
    %c0_i32 = arith.constant 0 : i32
    %c0_i32_0 = arith.constant 0 : i32
    %c0_i32_1 = arith.constant 0 : i32
    return %arg1, %c0_i32, %c0_i32_0 : i32, i32, i32
  }
  func.func @transform_5(%arg0: i32, %arg1: i32, %arg2: i32) -> (i32, i32, i32) {
    %c0_i32 = arith.constant 0 : i32
    %c0_i32_0 = arith.constant 0 : i32
    %c0_i32_1 = arith.constant 0 : i32
    return %arg1, %c0_i32, %c0_i32_0 : i32, i32, i32
  }
  func.func @transform_6(%arg0: i32, %arg1: i32, %arg2: i32) -> (i32, i32, i32) {
    %c0_i32 = arith.constant 0 : i32
    %c0_i32_0 = arith.constant 0 : i32
    %c0_i32_1 = arith.constant 0 : i32
    return %arg1, %c0_i32, %c0_i32_0 : i32, i32, i32
  }
  func.func @transform_7(%arg0: i32, %arg1: i32, %arg2: i32) -> (i32, i32, i32) {
    %c0_i32 = arith.constant 0 : i32
    %c0_i32_0 = arith.constant 0 : i32
    %c0_i32_1 = arith.constant 0 : i32
    return %arg1, %c0_i32, %c0_i32_0 : i32, i32, i32
  }
  func.func @transform_8(%arg0: i32, %arg1: i32, %arg2: i32) -> (i32, i32, i32) {
    %c0_i32 = arith.constant 0 : i32
    %c0_i32_0 = arith.constant 0 : i32
    %c0_i32_1 = arith.constant 0 : i32
    return %arg1, %c0_i32, %c0_i32_0 : i32, i32, i32
  }
  func.func @transform_9(%arg0: i32, %arg1: i32, %arg2: i32) -> (i32, i32, i32) {
    %c0_i32 = arith.constant 0 : i32
    %c0_i32_0 = arith.constant 0 : i32
    %c0_i32_1 = arith.constant 0 : i32
    return %arg1, %c0_i32, %c0_i32_0 : i32, i32, i32
  }
  func.func @transform_10(%arg0: i32, %arg1: i32, %arg2: i32) -> (i32, i32, i32) {
    %c0_i32 = arith.constant 0 : i32
    %c0_i32_0 = arith.constant 0 : i32
    %c0_i32_1 = arith.constant 0 : i32
    return %arg1, %c0_i32, %c0_i32_0 : i32, i32, i32
  }
  func.func @transform_11(%arg0: i32, %arg1: i32, %arg2: i32) -> (i32, i32, i32) {
    %c0_i32 = arith.constant 0 : i32
    %c0_i32_0 = arith.constant 0 : i32
    %c0_i32_1 = arith.constant 0 : i32
    return %arg1, %c0_i32, %c0_i32_0 : i32, i32, i32
  }
  func.func @transform_12(%arg0: i32, %arg1: i32, %arg2: i32) -> (i32, i32, i32) {
    %c0_i32 = arith.constant 0 : i32
    %c0_i32_0 = arith.constant 0 : i32
    %c0_i32_1 = arith.constant 0 : i32
    return %arg1, %c0_i32, %c0_i32_0 : i32, i32, i32
  }
  func.func @transform_13(%arg0: i32, %arg1: i32, %arg2: i32) -> (i32, i32, i32) {
    %c0_i32 = arith.constant 0 : i32
    %c0_i32_0 = arith.constant 0 : i32
    %c0_i32_1 = arith.constant 0 : i32
    return %arg1, %c0_i32, %c0_i32_0 : i32, i32, i32
  }
  func.func @transform_14(%arg0: i32, %arg1: i32, %arg2: i32) -> (i32, i32, i32) {
    %c0_i32 = arith.constant 0 : i32
    %c0_i32_0 = arith.constant 0 : i32
    %c0_i32_1 = arith.constant 0 : i32
    return %arg1, %c0_i32, %c0_i32_0 : i32, i32, i32
  }
  func.func @transform_15(%arg0: i32, %arg1: i32, %arg2: i32) -> (i32, i32, i32) {
    %c0_i32 = arith.constant 0 : i32
    %c0_i32_0 = arith.constant 0 : i32
    %c0_i32_1 = arith.constant 0 : i32
    return %arg1, %c0_i32, %c0_i32_0 : i32, i32, i32
  }
  func.func @transform_16(%arg0: i32, %arg1: i32, %arg2: i32) -> (i32, i32, i32) {
    %c0_i32 = arith.constant 0 : i32
    %c0_i32_0 = arith.constant 0 : i32
    %c0_i32_1 = arith.constant 0 : i32
    return %arg1, %c0_i32, %c0_i32_0 : i32, i32, i32
  }
  func.func @transform_17(%arg0: i32, %arg1: i32, %arg2: i32) -> (i32, i32, i32) {
    %c0_i32 = arith.constant 0 : i32
    %c0_i32_0 = arith.constant 0 : i32
    %c0_i32_1 = arith.constant 0 : i32
    return %arg1, %c0_i32, %c0_i32_0 : i32, i32, i32
  }
  func.func @transform_18(%arg0: i32, %arg1: i32, %arg2: i32) -> (i32, i32, i32) {
    %c0_i32 = arith.constant 0 : i32
    %c0_i32_0 = arith.constant 0 : i32
    return %arg0, %arg2, %c0_i32 : i32, i32, i32
  }
}

</mosaic_0001>

<llo_original>
// kernel: tpu_custom_call.1
$region0: #{tpu_custom_call.1}
  #allocation0 [shape = 'u32[]', space=smem, size = 0x4, offset = 0x4, fixed_abs, tag = 'smem constant byte address 0x4 - core index']
  #allocation1 [shape = 'u32[144,128]{1,0:T(1,128)}', space=vmem, size = 0x12000, scoped, tag = 'internal scratch']
  #allocation2 [shape = 'f32[8,32]{1,0:T(8,128)}', space=vmem, size = 0x1000, scoped, tag = 'scratch operand']
  #allocation3 [shape = 'bf16[8,32]{1,0:T(8,128)(2,1)}', space=vmem, size = 0x800, scoped, tag = 'scratch operand']
  #allocation4 [shape = 'bf16[8,32]{1,0:T(8,128)(2,1)}', space=vmem, size = 0x800, scoped, tag = 'scratch operand']
  #allocation5 [shape = 'f32[8,32]{1,0:T(8,128)}', space=vmem, size = 0x1000, scoped, tag = 'scratch operand']
  %s0 = inlined_call_operand.hbm [shape: f32[2,8,32], index: 0, kind: input, shape index: {}]
  %s1 = inlined_call_operand.hbm [shape: bf16[2,8,8], index: 1, kind: input, shape index: {}]
  %s2 = inlined_call_operand.vmem [shape: bf16[2,32,32], index: 2, kind: input, shape index: {}]
  %s3 = inlined_call_operand.vmem [shape: f32[2,1,32], index: 3, kind: input, shape index: {}]
  %s4 = inlined_call_operand.vmem [shape: bf16[2,32,32], index: 4, kind: input, shape index: {}]
  %s5 = inlined_call_operand.vmem [shape: f32[2,1,32], index: 5, kind: input, shape index: {}]
  %s6 = inlined_call_operand.vmem [shape: bf16[2,32,32], index: 6, kind: input, shape index: {}]
  %s7 = inlined_call_operand.vmem [shape: f32[2,1,32], index: 7, kind: input, shape index: {}]
  %s8 = inlined_call_operand.hbm [shape: bf16[2,32,32], index: 8, kind: input, shape index: {}]
  %s9 = inlined_call_operand.vmem [shape: f32[2,1,32], index: 9, kind: input, shape index: {}]
  %s10 = inlined_call_operand.vmem [shape: f32[2,1,32], index: 10, kind: input, shape index: {}]
  %s11 = inlined_call_operand.vmem [shape: f32[2,1,32], index: 11, kind: input, shape index: {}]
  %s12 = inlined_call_operand.hbm [shape: bf16[2,32,64], index: 12, kind: input, shape index: {}]
  %s13 = inlined_call_operand.vmem [shape: f32[2,1,64], index: 13, kind: input, shape index: {}]
  %s14 = inlined_call_operand.vmem [shape: bf16[2,64,32], index: 14, kind: input, shape index: {}]
  %s15 = inlined_call_operand.vmem [shape: f32[2,1,32], index: 15, kind: input, shape index: {}]
  %s16 = inlined_call_operand.vmem [shape: f32[2,1,32], index: 16, kind: input, shape index: {}]
  %s17 = inlined_call_operand.vmem [shape: f32[2,1,32], index: 17, kind: input, shape index: {}]
  %s18 = inlined_call_operand.hbm [shape: f32[2,8,32], index: 18, kind: output, shape index: {}]
  %s19 = sld [smem:[#allocation0]]
  $region129: #{tpu_custom_call.1} parent=0
    _
  %s21 = ssub.s32 1, %s19
  %s22 = scalar_select 0, %s21, %s19
  $region1: #{tpu_custom_call.1} parent=0
    #allocation6 [shape = 'u8[8192]{0}', space=vmem, size = 0x2000, scoped, tag = 'input window, operand 0']
    #allocation7 [shape = 's32[2]{0}', space=sflag, size = 0x8, scoped, tag = 'scoped memory for tpu_custom_call.1']
    #allocation8 [shape = 's32[2]{0}', space=sflag, size = 0x8, scoped, tag = 'scoped memory for tpu_custom_call.1']
    #allocation9 [shape = 'u8[4096]{0}', space=vmem, size = 0x1000, scoped, tag = 'input window, operand 1']
    #allocation10 [shape = 's32[2]{0}', space=sflag, size = 0x8, scoped, tag = 'scoped memory for tpu_custom_call.1']
    #allocation11 [shape = 'u8[16384]{0}', space=vmem, size = 0x4000, scoped, tag = 'input window, operand 8']
    #allocation12 [shape = 'u8[16384]{0}', space=vmem, size = 0x4000, scoped, tag = 'input window, operand 12']
    #allocation13 [shape = 's32[2]{0}', space=sflag, size = 0x8, scoped, tag = 'scoped memory for tpu_custom_call.1']
    #allocation14 [shape = 'u8[8192]{0}', space=vmem, size = 0x2000, scoped, tag = 'output window, operand 0']
    %23 = vsyncpa [#allocation7], 0
    %s24 = scalar_lea.sflag [#allocation7], 1
    %25 = vsyncpa %s24, 0
    %26 = vsyncpa [#allocation10], 0
    %s27 = scalar_lea.sflag [#allocation10], 1
    %28 = vsyncpa %s27, 0
    %29 = vsyncpa [#allocation13], 0
    %s30 = scalar_lea.sflag [#allocation13], 1
    %31 = vsyncpa %s30, 0
    %32 = vsyncpa [#allocation8], 0
    %s33 = scalar_lea.sflag [#allocation8], 1
    %34 = vsyncpa %s33, 0
    loop: start=0, step=1, limit=6
    $region2: #{tpu_custom_call.1} parent=1 // loop_pre_header
      _
    $region3: #{tpu_custom_call.1} parent=1 // loop_header
      %s36 = sphi 0, %s40
      %p37 = scmp.ge.s32.totalorder %s36, 6
      %s43 = sphi 0, %s62
      %s44 = sphi 0, %s58
      %s45 = sphi 0, %s54
      %s46 = sphi 0, %s43
      %s47 = sphi 0, %s44
      %s48 = sphi 0, %s45
      %s49 = sphi 0, %s46
      %s50 = sphi 0, %s47
      %s51 = sphi 0, %s48
      %s65 = sphi 0, %s67
      %s68 = sphi 0, %s65
      %s69 = sphi 0, %s68
      %s85 = sphi 0, %s69
      %s93 = sphi 0, %s95
      %s96 = sphi 0, %s93
      %s97 = sphi 0, %s96
      %s113 = sphi 0, %s97
      %s119 = sphi 0, %s121
      %s122 = sphi 0, %s119
      %s123 = sphi 0, %s122
      %s139 = sphi 0, %s123
      %s145 = sphi 0, %s147
      %s148 = sphi 0, %s145
      %s149 = sphi 0, %s148
      %s165 = sphi 0, %s149
      %s171 = sphi 0, %s173
      %s174 = sphi 0, %s171
      %s175 = sphi 0, %s174
      %s191 = sphi 0, %s175
      %s197 = sphi 0, %s199
      %s200 = sphi 0, %s197
      %s201 = sphi 0, %s200
      %s217 = sphi 0, %s201
      %s223 = sphi 0, %s225
      %s226 = sphi 0, %s223
      %s227 = sphi 0, %s226
      %s243 = sphi 0, %s227
      %s249 = sphi 0, %s251
      %s252 = sphi 0, %s249
      %s253 = sphi 0, %s252
      %s269 = sphi 0, %s253
      %s275 = sphi 0, %s277
      %s278 = sphi 0, %s275
      %s279 = sphi 0, %s278
      %s295 = sphi 0, %s279
      %s301 = sphi 0, %s303
      %s304 = sphi 0, %s301
      %s305 = sphi 0, %s304
      %s321 = sphi 0, %s305
      %s327 = sphi 0, %s329
      %s330 = sphi 0, %s327
      %s331 = sphi 0, %s330
      %s347 = sphi 0, %s331
      %s353 = sphi 0, %s355
      %s356 = sphi 0, %s353
      %s357 = sphi 0, %s356
      %s373 = sphi 0, %s357
      %s379 = sphi 0, %s381
      %s382 = sphi 0, %s379
      %s383 = sphi 0, %s382
      %s399 = sphi 0, %s383
      %s405 = sphi 0, %s407
      %s408 = sphi 0, %s405
      %s409 = sphi 0, %s408
      %s425 = sphi 0, %s409
      %s431 = sphi 0, %s433
      %s434 = sphi 0, %s431
      %s435 = sphi 0, %s434
      %s451 = sphi 0, %s435
      %s457 = sphi 0, %s459
      %s460 = sphi 0, %s457
      %s461 = sphi 0, %s460
      %s477 = sphi 0, %s461
      %s483 = sphi 0, %s485
      %s486 = sphi 0, %s483
      %s487 = sphi 0, %s486
      %s503 = sphi 0, %s487
      %s509 = sphi 0, %s511
      %s512 = sphi 0, %s509
      %s513 = sphi 0, %s512
      %s529 = sphi 0, %s513
      %s537 = sphi 0, %s539
      %s540 = sphi 0, %s537
      %s541 = sphi 0, %s540
      %s557 = sphi 0, %s541
    $region4: #{tpu_custom_call.1} parent=1 // loop_header_branch
      %39 = sbr.rel (%p37) target = $region8
    $region5: #{tpu_custom_call.1} parent=1 // loop_body
      %s41 = ssub.s32 %s36, 1
      %s42 = ssub.s32 %s36, 2
      %s52 = sadd.s32 1, %s45
      %p53 = scmp.ge.s32.totalorder %s52, 1
      %s54 = scalar_select %p53, 0, %s52
      %s55 = sadd.s32 1, %s44
      %s56 = scalar_select %p53, %s55, %s44
      %p57 = scmp.ge.s32.totalorder %s56, 2
      %s58 = scalar_select %p57, 0, %s56
      %s59 = sadd.s32 1, %s43
      %s60 = scalar_select %p57, %s59, %s43
      %p61 = scmp.ge.s32.totalorder %s60, 2
      %s62 = scalar_select %p61, 0, %s60
      %s63 = ssub.s32 %s43, %s62
      %p64 = scmp.eq.s32.totalorder %s63, 0
      %s66 = sadd.s32 %s65, 1
      %s67 = scalar_select %p64, %s65, %s66
      %p70 = pneg %p64
      %p71 = scmp.eq.s32.totalorder %s36, 3
      %p72 = por %p70, %p71
      %p73 = scmp.ne.s32.totalorder %s65, %s68
      %p74 = scmp.eq.s32.totalorder %s36, 0
      %p75 = por %p73, %p74
      %p76 = scmp.ne.s32.totalorder %s65, %s68
      %p77 = scmp.eq.s32.totalorder %s41, 3
      %p78 = por %p76, %p77
      %p79 = scmp.ne.s32.totalorder %s68, %s69
      %p80 = scmp.eq.s32.totalorder %s41, 0
      %p81 = por %p79, %p80
      %p82 = scmp.ne.s32.totalorder %s68, %s69
      %p83 = scmp.eq.s32.totalorder %s42, 3
      %p84 = por %p82, %p83
      %p86 = scmp.ne.s32.totalorder %s69, %s85
      %p87 = scmp.eq.s32.totalorder %s42, 0
      %p88 = por %p86, %p87
      %s89 = ssub.s32 %s43, %s62
      %s90 = ssub.s32 %s45, %s54
      %s91 = sor.u32 %s89, %s90
      %p92 = scmp.eq.s32.totalorder %s91, 0
      %s94 = sadd.s32 %s93, 1
      %s95 = scalar_select %p92, %s93, %s94
      %p98 = pneg %p92
      %p99 = scmp.eq.s32.totalorder %s36, 3
      %p100 = por %p98, %p99
      %p101 = scmp.ne.s32.totalorder %s93, %s96
      %p102 = scmp.eq.s32.totalorder %s36, 0
      %p103 = por %p101, %p102
      %p104 = scmp.ne.s32.totalorder %s93, %s96
      %p105 = scmp.eq.s32.totalorder %s41, 3
      %p106 = por %p104, %p105
      %p107 = scmp.ne.s32.totalorder %s96, %s97
      %p108 = scmp.eq.s32.totalorder %s41, 0
      %p109 = por %p107, %p108
      %p110 = scmp.ne.s32.totalorder %s96, %s97
      %p111 = scmp.eq.s32.totalorder %s42, 3
      %p112 = por %p110, %p111
      %p114 = scmp.ne.s32.totalorder %s97, %s113
      %p115 = scmp.eq.s32.totalorder %s42, 0
      %p116 = por %p114, %p115
      %s117 = ssub.s32 %s44, %s58
      %p118 = scmp.eq.s32.totalorder %s117, 0
      %s120 = sadd.s32 %s119, 1
      %s121 = scalar_select %p118, %s119, %s120
      %p124 = pneg %p118
      %p125 = scmp.eq.s32.totalorder %s36, 3
      %p126 = por %p124, %p125
      %p127 = scmp.ne.s32.totalorder %s119, %s122
      %p128 = scmp.eq.s32.totalorder %s36, 0
      %p129 = por %p127, %p128
      %p130 = scmp.ne.s32.totalorder %s119, %s122
      %p131 = scmp.eq.s32.totalorder %s41, 3
      %p132 = por %p130, %p131
      %p133 = scmp.ne.s32.totalorder %s122, %s123
      %p134 = scmp.eq.s32.totalorder %s41, 0
      %p135 = por %p133, %p134
      %p136 = scmp.ne.s32.totalorder %s122, %s123
      %p137 = scmp.eq.s32.totalorder %s42, 3
      %p138 = por %p136, %p137
      %p140 = scmp.ne.s32.totalorder %s123, %s139
      %p141 = scmp.eq.s32.totalorder %s42, 0
      %p142 = por %p140, %p141
      %s143 = ssub.s32 %s44, %s58
      %p144 = scmp.eq.s32.totalorder %s143, 0
      %s146 = sadd.s32 %s145, 1
      %s147 = scalar_select %p144, %s145, %s146
      %p150 = pneg %p144
      %p151 = scmp.eq.s32.totalorder %s36, 3
      %p152 = por %p150, %p151
      %p153 = scmp.ne.s32.totalorder %s145, %s148
      %p154 = scmp.eq.s32.totalorder %s36, 0
      %p155 = por %p153, %p154
      %p156 = scmp.ne.s32.totalorder %s145, %s148
      %p157 = scmp.eq.s32.totalorder %s41, 3
      %p158 = por %p156, %p157
      %p159 = scmp.ne.s32.totalorder %s148, %s149
      %p160 = scmp.eq.s32.totalorder %s41, 0
      %p161 = por %p159, %p160
      %p162 = scmp.ne.s32.totalorder %s148, %s149
      %p163 = scmp.eq.s32.totalorder %s42, 3
      %p164 = por %p162, %p163
      %p166 = scmp.ne.s32.totalorder %s149, %s165
      %p167 = scmp.eq.s32.totalorder %s42, 0
      %p168 = por %p166, %p167
      %s169 = ssub.s32 %s44, %s58
      %p170 = scmp.eq.s32.totalorder %s169, 0
      %s172 = sadd.s32 %s171, 1
      %s173 = scalar_select %p170, %s171, %s172
      %p176 = pneg %p170
      %p177 = scmp.eq.s32.totalorder %s36, 3
      %p178 = por %p176, %p177
      %p179 = scmp.ne.s32.totalorder %s171, %s174
      %p180 = scmp.eq.s32.totalorder %s36, 0
      %p181 = por %p179, %p180
      %p182 = scmp.ne.s32.totalorder %s171, %s174
      %p183 = scmp.eq.s32.totalorder %s41, 3
      %p184 = por %p182, %p183
      %p185 = scmp.ne.s32.totalorder %s174, %s175
      %p186 = scmp.eq.s32.totalorder %s41, 0
      %p187 = por %p185, %p186
      %p188 = scmp.ne.s32.totalorder %s174, %s175
      %p189 = scmp.eq.s32.totalorder %s42, 3
      %p190 = por %p188, %p189
      %p192 = scmp.ne.s32.totalorder %s175, %s191
      %p193 = scmp.eq.s32.totalorder %s42, 0
      %p194 = por %p192, %p193
      %s195 = ssub.s32 %s44, %s58
      %p196 = scmp.eq.s32.totalorder %s195, 0
      %s198 = sadd.s32 %s197, 1
      %s199 = scalar_select %p196, %s197, %s198
      %p202 = pneg %p196
      %p203 = scmp.eq.s32.totalorder %s36, 3
      %p204 = por %p202, %p203
      %p205 = scmp.ne.s32.totalorder %s197, %s200
      %p206 = scmp.eq.s32.totalorder %s36, 0
      %p207 = por %p205, %p206
      %p208 = scmp.ne.s32.totalorder %s197, %s200
      %p209 = scmp.eq.s32.totalorder %s41, 3
      %p210 = por %p208, %p209
      %p211 = scmp.ne.s32.totalorder %s200, %s201
      %p212 = scmp.eq.s32.totalorder %s41, 0
      %p213 = por %p211, %p212
      %p214 = scmp.ne.s32.totalorder %s200, %s201
      %p215 = scmp.eq.s32.totalorder %s42, 3
      %p216 = por %p214, %p215
      %p218 = scmp.ne.s32.totalorder %s201, %s217
      %p219 = scmp.eq.s32.totalorder %s42, 0
      %p220 = por %p218, %p219
      %s221 = ssub.s32 %s44, %s58
      %p222 = scmp.eq.s32.totalorder %s221, 0
      %s224 = sadd.s32 %s223, 1
      %s225 = scalar_select %p222, %s223, %s224
      %p228 = pneg %p222
      %p229 = scmp.eq.s32.totalorder %s36, 3
      %p230 = por %p228, %p229
      %p231 = scmp.ne.s32.totalorder %s223, %s226
      %p232 = scmp.eq.s32.totalorder %s36, 0
      %p233 = por %p231, %p232
      %p234 = scmp.ne.s32.totalorder %s223, %s226
      %p235 = scmp.eq.s32.totalorder %s41, 3
      %p236 = por %p234, %p235
      %p237 = scmp.ne.s32.totalorder %s226, %s227
      %p238 = scmp.eq.s32.totalorder %s41, 0
      %p239 = por %p237, %p238
      %p240 = scmp.ne.s32.totalorder %s226, %s227
      %p241 = scmp.eq.s32.totalorder %s42, 3
      %p242 = por %p240, %p241
      %p244 = scmp.ne.s32.totalorder %s227, %s243
      %p245 = scmp.eq.s32.totalorder %s42, 0
      %p246 = por %p244, %p245
      %s247 = ssub.s32 %s44, %s58
      %p248 = scmp.eq.s32.totalorder %s247, 0
      %s250 = sadd.s32 %s249, 1
      %s251 = scalar_select %p248, %s249, %s250
      %p254 = pneg %p248
      %p255 = scmp.eq.s32.totalorder %s36, 3
      %p256 = por %p254, %p255
      %p257 = scmp.ne.s32.totalorder %s249, %s252
      %p258 = scmp.eq.s32.totalorder %s36, 0
      %p259 = por %p257, %p258
      %p260 = scmp.ne.s32.totalorder %s249, %s252
      %p261 = scmp.eq.s32.totalorder %s41, 3
      %p262 = por %p260, %p261
      %p263 = scmp.ne.s32.totalorder %s252, %s253
      %p264 = scmp.eq.s32.totalorder %s41, 0
      %p265 = por %p263, %p264
      %p266 = scmp.ne.s32.totalorder %s252, %s253
      %p267 = scmp.eq.s32.totalorder %s42, 3
      %p268 = por %p266, %p267
      %p270 = scmp.ne.s32.totalorder %s253, %s269
      %p271 = scmp.eq.s32.totalorder %s42, 0
      %p272 = por %p270, %p271
      %s273 = ssub.s32 %s44, %s58
      %p274 = scmp.eq.s32.totalorder %s273, 0
      %s276 = sadd.s32 %s275, 1
      %s277 = scalar_select %p274, %s275, %s276
      %p280 = pneg %p274
      %p281 = scmp.eq.s32.totalorder %s36, 3
      %p282 = por %p280, %p281
      %p283 = scmp.ne.s32.totalorder %s275, %s278
      %p284 = scmp.eq.s32.totalorder %s36, 0
      %p285 = por %p283, %p284
      %p286 = scmp.ne.s32.totalorder %s275, %s278
      %p287 = scmp.eq.s32.totalorder %s41, 3
      %p288 = por %p286, %p287
      %p289 = scmp.ne.s32.totalorder %s278, %s279
      %p290 = scmp.eq.s32.totalorder %s41, 0
      %p291 = por %p289, %p290
      %p292 = scmp.ne.s32.totalorder %s278, %s279
      %p293 = scmp.eq.s32.totalorder %s42, 3
      %p294 = por %p292, %p293
      %p296 = scmp.ne.s32.totalorder %s279, %s295
      %p297 = scmp.eq.s32.totalorder %s42, 0
      %p298 = por %p296, %p297
      %s299 = ssub.s32 %s44, %s58
      %p300 = scmp.eq.s32.totalorder %s299, 0
      %s302 = sadd.s32 %s301, 1
      %s303 = scalar_select %p300, %s301, %s302
      %p306 = pneg %p300
      %p307 = scmp.eq.s32.totalorder %s36, 3
      %p308 = por %p306, %p307
      %p309 = scmp.ne.s32.totalorder %s301, %s304
      %p310 = scmp.eq.s32.totalorder %s36, 0
      %p311 = por %p309, %p310
      %p312 = scmp.ne.s32.totalorder %s301, %s304
      %p313 = scmp.eq.s32.totalorder %s41, 3
      %p314 = por %p312, %p313
      %p315 = scmp.ne.s32.totalorder %s304, %s305
      %p316 = scmp.eq.s32.totalorder %s41, 0
      %p317 = por %p315, %p316
      %p318 = scmp.ne.s32.totalorder %s304, %s305
      %p319 = scmp.eq.s32.totalorder %s42, 3
      %p320 = por %p318, %p319
      %p322 = scmp.ne.s32.totalorder %s305, %s321
      %p323 = scmp.eq.s32.totalorder %s42, 0
      %p324 = por %p322, %p323
      %s325 = ssub.s32 %s44, %s58
      %p326 = scmp.eq.s32.totalorder %s325, 0
      %s328 = sadd.s32 %s327, 1
      %s329 = scalar_select %p326, %s327, %s328
      %p332 = pneg %p326
      %p333 = scmp.eq.s32.totalorder %s36, 3
      %p334 = por %p332, %p333
      %p335 = scmp.ne.s32.totalorder %s327, %s330
      %p336 = scmp.eq.s32.totalorder %s36, 0
      %p337 = por %p335, %p336
      %p338 = scmp.ne.s32.totalorder %s327, %s330
      %p339 = scmp.eq.s32.totalorder %s41, 3
      %p340 = por %p338, %p339
      %p341 = scmp.ne.s32.totalorder %s330, %s331
      %p342 = scmp.eq.s32.totalorder %s41, 0
      %p343 = por %p341, %p342
      %p344 = scmp.ne.s32.totalorder %s330, %s331
      %p345 = scmp.eq.s32.totalorder %s42, 3
      %p346 = por %p344, %p345
      %p348 = scmp.ne.s32.totalorder %s331, %s347
      %p349 = scmp.eq.s32.totalorder %s42, 0
      %p350 = por %p348, %p349
      %s351 = ssub.s32 %s44, %s58
      %p352 = scmp.eq.s32.totalorder %s351, 0
      %s354 = sadd.s32 %s353, 1
      %s355 = scalar_select %p352, %s353, %s354
      %p358 = pneg %p352
      %p359 = scmp.eq.s32.totalorder %s36, 3
      %p360 = por %p358, %p359
      %p361 = scmp.ne.s32.totalorder %s353, %s356
      %p362 = scmp.eq.s32.totalorder %s36, 0
      %p363 = por %p361, %p362
      %p364 = scmp.ne.s32.totalorder %s353, %s356
      %p365 = scmp.eq.s32.totalorder %s41, 3
      %p366 = por %p364, %p365
      %p367 = scmp.ne.s32.totalorder %s356, %s357
      %p368 = scmp.eq.s32.totalorder %s41, 0
      %p369 = por %p367, %p368
      %p370 = scmp.ne.s32.totalorder %s356, %s357
      %p371 = scmp.eq.s32.totalorder %s42, 3
      %p372 = por %p370, %p371
      %p374 = scmp.ne.s32.totalorder %s357, %s373
      %p375 = scmp.eq.s32.totalorder %s42, 0
      %p376 = por %p374, %p375
      %s377 = ssub.s32 %s44, %s58
      %p378 = scmp.eq.s32.totalorder %s377, 0
      %s380 = sadd.s32 %s379, 1
      %s381 = scalar_select %p378, %s379, %s380
      %p384 = pneg %p378
      %p385 = scmp.eq.s32.totalorder %s36, 3
      %p386 = por %p384, %p385
      %p387 = scmp.ne.s32.totalorder %s379, %s382
      %p388 = scmp.eq.s32.totalorder %s36, 0
      %p389 = por %p387, %p388
      %p390 = scmp.ne.s32.totalorder %s379, %s382
      %p391 = scmp.eq.s32.totalorder %s41, 3
      %p392 = por %p390, %p391
      %p393 = scmp.ne.s32.totalorder %s382, %s383
      %p394 = scmp.eq.s32.totalorder %s41, 0
      %p395 = por %p393, %p394
      %p396 = scmp.ne.s32.totalorder %s382, %s383
      %p397 = scmp.eq.s32.totalorder %s42, 3
      %p398 = por %p396, %p397
      %p400 = scmp.ne.s32.totalorder %s383, %s399
      %p401 = scmp.eq.s32.totalorder %s42, 0
      %p402 = por %p400, %p401
      %s403 = ssub.s32 %s44, %s58
      %p404 = scmp.eq.s32.totalorder %s403, 0
      %s406 = sadd.s32 %s405, 1
      %s407 = scalar_select %p404, %s405, %s406
      %p410 = pneg %p404
      %p411 = scmp.eq.s32.totalorder %s36, 3
      %p412 = por %p410, %p411
      %p413 = scmp.ne.s32.totalorder %s405, %s408
      %p414 = scmp.eq.s32.totalorder %s36, 0
      %p415 = por %p413, %p414
      %p416 = scmp.ne.s32.totalorder %s405, %s408
      %p417 = scmp.eq.s32.totalorder %s41, 3
      %p418 = por %p416, %p417
      %p419 = scmp.ne.s32.totalorder %s408, %s409
      %p420 = scmp.eq.s32.totalorder %s41, 0
      %p421 = por %p419, %p420
      %p422 = scmp.ne.s32.totalorder %s408, %s409
      %p423 = scmp.eq.s32.totalorder %s42, 3
      %p424 = por %p422, %p423
      %p426 = scmp.ne.s32.totalorder %s409, %s425
      %p427 = scmp.eq.s32.totalorder %s42, 0
      %p428 = por %p426, %p427
      %s429 = ssub.s32 %s44, %s58
      %p430 = scmp.eq.s32.totalorder %s429, 0
      %s432 = sadd.s32 %s431, 1
      %s433 = scalar_select %p430, %s431, %s432
      %p436 = pneg %p430
      %p437 = scmp.eq.s32.totalorder %s36, 3
      %p438 = por %p436, %p437
      %p439 = scmp.ne.s32.totalorder %s431, %s434
      %p440 = scmp.eq.s32.totalorder %s36, 0
      %p441 = por %p439, %p440
      %p442 = scmp.ne.s32.totalorder %s431, %s434
      %p443 = scmp.eq.s32.totalorder %s41, 3
      %p444 = por %p442, %p443
      %p445 = scmp.ne.s32.totalorder %s434, %s435
      %p446 = scmp.eq.s32.totalorder %s41, 0
      %p447 = por %p445, %p446
      %p448 = scmp.ne.s32.totalorder %s434, %s435
      %p449 = scmp.eq.s32.totalorder %s42, 3
      %p450 = por %p448, %p449
      %p452 = scmp.ne.s32.totalorder %s435, %s451
      %p453 = scmp.eq.s32.totalorder %s42, 0
      %p454 = por %p452, %p453
      %s455 = ssub.s32 %s44, %s58
      %p456 = scmp.eq.s32.totalorder %s455, 0
      %s458 = sadd.s32 %s457, 1
      %s459 = scalar_select %p456, %s457, %s458
      %p462 = pneg %p456
      %p463 = scmp.eq.s32.totalorder %s36, 3
      %p464 = por %p462, %p463
      %p465 = scmp.ne.s32.totalorder %s457, %s460
      %p466 = scmp.eq.s32.totalorder %s36, 0
      %p467 = por %p465, %p466
      %p468 = scmp.ne.s32.totalorder %s457, %s460
      %p469 = scmp.eq.s32.totalorder %s41, 3
      %p470 = por %p468, %p469
      %p471 = scmp.ne.s32.totalorder %s460, %s461
      %p472 = scmp.eq.s32.totalorder %s41, 0
      %p473 = por %p471, %p472
      %p474 = scmp.ne.s32.totalorder %s460, %s461
      %p475 = scmp.eq.s32.totalorder %s42, 3
      %p476 = por %p474, %p475
      %p478 = scmp.ne.s32.totalorder %s461, %s477
      %p479 = scmp.eq.s32.totalorder %s42, 0
      %p480 = por %p478, %p479
      %s481 = ssub.s32 %s44, %s58
      %p482 = scmp.eq.s32.totalorder %s481, 0
      %s484 = sadd.s32 %s483, 1
      %s485 = scalar_select %p482, %s483, %s484
      %p488 = pneg %p482
      %p489 = scmp.eq.s32.totalorder %s36, 3
      %p490 = por %p488, %p489
      %p491 = scmp.ne.s32.totalorder %s483, %s486
      %p492 = scmp.eq.s32.totalorder %s36, 0
      %p493 = por %p491, %p492
      %p494 = scmp.ne.s32.totalorder %s483, %s486
      %p495 = scmp.eq.s32.totalorder %s41, 3
      %p496 = por %p494, %p495
      %p497 = scmp.ne.s32.totalorder %s486, %s487
      %p498 = scmp.eq.s32.totalorder %s41, 0
      %p499 = por %p497, %p498
      %p500 = scmp.ne.s32.totalorder %s486, %s487
      %p501 = scmp.eq.s32.totalorder %s42, 3
      %p502 = por %p500, %p501
      %p504 = scmp.ne.s32.totalorder %s487, %s503
      %p505 = scmp.eq.s32.totalorder %s42, 0
      %p506 = por %p504, %p505
      %s507 = ssub.s32 %s44, %s58
      %p508 = scmp.eq.s32.totalorder %s507, 0
      %s510 = sadd.s32 %s509, 1
      %s511 = scalar_select %p508, %s509, %s510
      %p514 = pneg %p508
      %p515 = scmp.eq.s32.totalorder %s36, 3
      %p516 = por %p514, %p515
      %p517 = scmp.ne.s32.totalorder %s509, %s512
      %p518 = scmp.eq.s32.totalorder %s36, 0
      %p519 = por %p517, %p518
      %p520 = scmp.ne.s32.totalorder %s509, %s512
      %p521 = scmp.eq.s32.totalorder %s41, 3
      %p522 = por %p520, %p521
      %p523 = scmp.ne.s32.totalorder %s512, %s513
      %p524 = scmp.eq.s32.totalorder %s41, 0
      %p525 = por %p523, %p524
      %p526 = scmp.ne.s32.totalorder %s512, %s513
      %p527 = scmp.eq.s32.totalorder %s42, 3
      %p528 = por %p526, %p527
      %p530 = scmp.ne.s32.totalorder %s513, %s529
      %p531 = scmp.eq.s32.totalorder %s42, 0
      %p532 = por %p530, %p531
      %s533 = ssub.s32 %s43, %s62
      %s534 = ssub.s32 %s45, %s54
      %s535 = sor.u32 %s533, %s534
      %p536 = scmp.eq.s32.totalorder %s535, 0
      %s538 = sadd.s32 %s537, 1
      %s539 = scalar_select %p536, %s537, %s538
      %p542 = pneg %p536
      %p543 = scmp.eq.s32.totalorder %s36, 3
      %p544 = por %p542, %p543
      %p545 = scmp.ne.s32.totalorder %s537, %s540
      %p546 = scmp.eq.s32.totalorder %s36, 0
      %p547 = por %p545, %p546
      %p548 = scmp.ne.s32.totalorder %s537, %s540
      %p549 = scmp.eq.s32.totalorder %s41, 3
      %p550 = por %p548, %p549
      %p551 = scmp.ne.s32.totalorder %s540, %s541
      %p552 = scmp.eq.s32.totalorder %s41, 0
      %p553 = por %p551, %p552
      %p554 = scmp.ne.s32.totalorder %s540, %s541
      %p555 = scmp.eq.s32.totalorder %s42, 3
      %p556 = por %p554, %p555
      %p558 = scmp.ne.s32.totalorder %s541, %s557
      %p559 = scmp.eq.s32.totalorder %s42, 0
      %p560 = por %p558, %p559
      %p561 = scmp.le.s32.totalorder 1, %s36
      %p562 = scmp.lt.s32.totalorder %s36, 5
      %p563 = pnand %p561, %p562
      %p564 = pneg %p563
      // Predicated region
      $region9: #{tpu_custom_call.1} parent=5 // pred_check
        _
      $region10: #{tpu_custom_call.1} parent=5 // pred_check_branch
        %566 = sbr.rel (%p563) target = $region12
      $region11: #{tpu_custom_call.1} parent=5 // pred_region
        %s567 = ssub.s32 %s36, 1
      $region12: #{tpu_custom_call.1} parent=5 // pred_fallthru
        _
      %p568 = scmp.lt.s32.totalorder %s36, 4
      // Predicated region
      $region13: #{tpu_custom_call.1} parent=5 // pred_check
        %p569 = pneg %p568
      $region14: #{tpu_custom_call.1} parent=5 // pred_check_branch
        %571 = sbr.rel (%p569) target = $region16
      $region15: #{tpu_custom_call.1} parent=5 // pred_region
        // Predicated region
        $region17: #{tpu_custom_call.1} parent=15 // pred_check
          %p572 = pneg %p75
        $region18: #{tpu_custom_call.1} parent=15 // pred_check_branch
          %574 = sbr.rel (%p572) target = $region20
        $region19: #{tpu_custom_call.1} parent=15 // pred_region
          %s575 = sand.u32 %s65, 1
          %s576 = scalar_lea.sflag [#allocation7], %s575
          %s577 = sand.u32 %s65, 1
          %s578 = smul.addr %s577, 8
          %s579 = scalar_lea.vmem [#allocation6], %s578
          %s581 = ssub.s32 128, 128
          %582 = vsyncadd %s576, %s581
          %s583 = smul.addr %s43, 128
          %s584 = scalar_lea.hbm %s0, %s583
          %s586 = sshll.u32 %s579, 4
          %s587 = int_to_ptr.vmem [resolvable:$true] %s586
          %589 = dma.hbm_to_vmem [thread:$0]  %s584, 128, %s587, %s576
        $region20: #{tpu_custom_call.1} parent=15 // pred_fallthru
          _
        // Predicated region
        $region21: #{tpu_custom_call.1} parent=15 // pred_check
          %p590 = pneg %p103
        $region22: #{tpu_custom_call.1} parent=15 // pred_check_branch
          %592 = sbr.rel (%p590) target = $region24
        $region23: #{tpu_custom_call.1} parent=15 // pred_region
          %s593 = sand.u32 %s36, 1
          %s594 = scalar_lea.sflag [#allocation10], %s593
          %s595 = sand.u32 %s93, 1
          %s596 = smul.addr %s595, 4
          %s597 = scalar_lea.vmem [#allocation9], %s596
          %s599 = ssub.s32 64, 64
          %600 = vsyncadd %s594, %s599
          %s601 = sadd.s32 %s45, %s43
          %s602 = smul.addr %s601, 64
          %s603 = scalar_lea.hbm %s1, %s602
          %s605 = sshll.u32 %s597, 4
          %s606 = int_to_ptr.vmem [resolvable:$true] %s605
          %608 = dma.hbm_to_vmem [thread:$0]  %s603, 64, %s606, %s594
        $region24: #{tpu_custom_call.1} parent=15 // pred_fallthru
          _
        // Predicated region
        $region25: #{tpu_custom_call.1} parent=15 // pred_check
          %p609 = pneg %p129
        $region26: #{tpu_custom_call.1} parent=15 // pred_check_branch
          %611 = sbr.rel (%p609) target = $region28
        $region27: #{tpu_custom_call.1} parent=15 // pred_region
          %p612 = scmp.lt.s32.totalorder %s44, 1
          %s613 = scalar_select %p612, %s44, 1
          %s614 = smul.addr %s613, 4
          %s615 = smul.addr %s614, 4
          %s616 = scalar_lea.vmem %s2, %s615
        $region28: #{tpu_custom_call.1} parent=15 // pred_fallthru
          _
        // Predicated region
        $region29: #{tpu_custom_call.1} parent=15 // pred_check
          %p617 = pneg %p155
        $region30: #{tpu_custom_call.1} parent=15 // pred_check_branch
          %619 = sbr.rel (%p617) target = $region32
        $region31: #{tpu_custom_call.1} parent=15 // pred_region
          %p620 = scmp.lt.s32.totalorder %s44, 1
          %s621 = scalar_select %p620, %s44, 1
          %s622 = scalar_lea.vmem %s3, %s621
        $region32: #{tpu_custom_call.1} parent=15 // pred_fallthru
          _
        // Predicated region
        $region33: #{tpu_custom_call.1} parent=15 // pred_check
          %p623 = pneg %p181
        $region34: #{tpu_custom_call.1} parent=15 // pred_check_branch
          %625 = sbr.rel (%p623) target = $region36
        $region35: #{tpu_custom_call.1} parent=15 // pred_region
          %p626 = scmp.lt.s32.totalorder %s44, 1
          %s627 = scalar_select %p626, %s44, 1
          %s628 = smul.addr %s627, 4
          %s629 = smul.addr %s628, 4
          %s630 = scalar_lea.vmem %s4, %s629
        $region36: #{tpu_custom_call.1} parent=15 // pred_fallthru
          _
        // Predicated region
        $region37: #{tpu_custom_call.1} parent=15 // pred_check
          %p631 = pneg %p207
        $region38: #{tpu_custom_call.1} parent=15 // pred_check_branch
          %633 = sbr.rel (%p631) target = $region40
        $region39: #{tpu_custom_call.1} parent=15 // pred_region
          %p634 = scmp.lt.s32.totalorder %s44, 1
          %s635 = scalar_select %p634, %s44, 1
          %s636 = scalar_lea.vmem %s5, %s635
        $region40: #{tpu_custom_call.1} parent=15 // pred_fallthru
          _
        // Predicated region
        $region41: #{tpu_custom_call.1} parent=15 // pred_check
          %p637 = pneg %p233
        $region42: #{tpu_custom_call.1} parent=15 // pred_check_branch
          %639 = sbr.rel (%p637) target = $region44
        $region43: #{tpu_custom_call.1} parent=15 // pred_region
          %p640 = scmp.lt.s32.totalorder %s44, 1
          %s641 = scalar_select %p640, %s44, 1
          %s642 = smul.addr %s641, 4
          %s643 = smul.addr %s642, 4
          %s644 = scalar_lea.vmem %s6, %s643
        $region44: #{tpu_custom_call.1} parent=15 // pred_fallthru
          _
        // Predicated region
        $region45: #{tpu_custom_call.1} parent=15 // pred_check
          %p645 = pneg %p259
        $region46: #{tpu_custom_call.1} parent=15 // pred_check_branch
          %647 = sbr.rel (%p645) target = $region48
        $region47: #{tpu_custom_call.1} parent=15 // pred_region
          %p648 = scmp.lt.s32.totalorder %s44, 1
          %s649 = scalar_select %p648, %s44, 1
          %s650 = scalar_lea.vmem %s7, %s649
        $region48: #{tpu_custom_call.1} parent=15 // pred_fallthru
          _
        // Predicated region
        $region49: #{tpu_custom_call.1} parent=15 // pred_check
          %p651 = pneg %p285
        $region50: #{tpu_custom_call.1} parent=15 // pred_check_branch
          %653 = sbr.rel (%p651) target = $region52
        $region51: #{tpu_custom_call.1} parent=15 // pred_region
          %s654 = sand.u32 %s36, 1
          %s655 = scalar_lea.sflag [#allocation10], %s654
          %s656 = sand.u32 %s275, 1
          %s657 = smul.addr %s656, 16
          %s658 = scalar_lea.vmem [#allocation11], %s657
          %s660 = ssub.s32 256, 256
          %661 = vsyncadd %s655, %s660
          %s662 = smul.addr %s44, 4
          %s663 = smul.addr %s662, 64
          %s664 = scalar_lea.hbm %s8, %s663
          %s665 = sshll.u32 %s658, 4
          %s666 = int_to_ptr.vmem [resolvable:$true] %s665
          %671 = dma.hbm_to_vmem [thread:$0]  %s664, 256, %s666, %s655, 64, 64, 4
        $region52: #{tpu_custom_call.1} parent=15 // pred_fallthru
          _
        // Predicated region
        $region53: #{tpu_custom_call.1} parent=15 // pred_check
          %p672 = pneg %p311
        $region54: #{tpu_custom_call.1} parent=15 // pred_check_branch
          %674 = sbr.rel (%p672) target = $region56
        $region55: #{tpu_custom_call.1} parent=15 // pred_region
          %p675 = scmp.lt.s32.totalorder %s44, 1
          %s676 = scalar_select %p675, %s44, 1
          %s677 = scalar_lea.vmem %s9, %s676
        $region56: #{tpu_custom_call.1} parent=15 // pred_fallthru
          _
        // Predicated region
        $region57: #{tpu_custom_call.1} parent=15 // pred_check
          %p678 = pneg %p337
        $region58: #{tpu_custom_call.1} parent=15 // pred_check_branch
          %680 = sbr.rel (%p678) target = $region60
        $region59: #{tpu_custom_call.1} parent=15 // pred_region
          %p681 = scmp.lt.s32.totalorder %s44, 1
          %s682 = scalar_select %p681, %s44, 1
          %s683 = scalar_lea.vmem %s10, %s682
        $region60: #{tpu_custom_call.1} parent=15 // pred_fallthru
          _
        // Predicated region
        $region61: #{tpu_custom_call.1} parent=15 // pred_check
          %p684 = pneg %p363
        $region62: #{tpu_custom_call.1} parent=15 // pred_check_branch
          %686 = sbr.rel (%p684) target = $region64
        $region63: #{tpu_custom_call.1} parent=15 // pred_region
          %p687 = scmp.lt.s32.totalorder %s44, 1
          %s688 = scalar_select %p687, %s44, 1
          %s689 = scalar_lea.vmem %s11, %s688
        $region64: #{tpu_custom_call.1} parent=15 // pred_fallthru
          _
        // Predicated region
        $region65: #{tpu_custom_call.1} parent=15 // pred_check
          %p690 = pneg %p389
        $region66: #{tpu_custom_call.1} parent=15 // pred_check_branch
          %692 = sbr.rel (%p690) target = $region68
        $region67: #{tpu_custom_call.1} parent=15 // pred_region
          %s693 = sand.u32 %s379, 1
          %s694 = scalar_lea.sflag [#allocation13], %s693
          %s695 = sand.u32 %s379, 1
          %s696 = smul.addr %s695, 16
          %s697 = scalar_lea.vmem [#allocation12], %s696
          %s699 = ssub.s32 256, 256
          %700 = vsyncadd %s694, %s699
          %s701 = smul.addr %s44, 4
          %s702 = smul.addr %s701, 64
          %s703 = scalar_lea.hbm %s12, %s702
          %s704 = sshll.u32 %s697, 4
          %s705 = int_to_ptr.vmem [resolvable:$true] %s704
          %710 = dma.hbm_to_vmem [thread:$0]  %s703, 256, %s705, %s694, 64, 64, 4
        $region68: #{tpu_custom_call.1} parent=15 // pred_fallthru
          _
        // Predicated region
        $region69: #{tpu_custom_call.1} parent=15 // pred_check
          %p711 = pneg %p415
        $region70: #{tpu_custom_call.1} parent=15 // pred_check_branch
          %713 = sbr.rel (%p711) target = $region72
        $region71: #{tpu_custom_call.1} parent=15 // pred_region
          %p714 = scmp.lt.s32.totalorder %s44, 1
          %s715 = scalar_select %p714, %s44, 1
          %s716 = scalar_lea.vmem %s13, %s715
        $region72: #{tpu_custom_call.1} parent=15 // pred_fallthru
          _
        // Predicated region
        $region73: #{tpu_custom_call.1} parent=15 // pred_check
          %p717 = pneg %p441
        $region74: #{tpu_custom_call.1} parent=15 // pred_check_branch
          %719 = sbr.rel (%p717) target = $region76
        $region75: #{tpu_custom_call.1} parent=15 // pred_region
          %p720 = scmp.lt.s32.totalorder %s44, 1
          %s721 = scalar_select %p720, %s44, 1
          %s722 = smul.addr %s721, 8
          %s723 = smul.addr %s722, 4
          %s724 = scalar_lea.vmem %s14, %s723
        $region76: #{tpu_custom_call.1} parent=15 // pred_fallthru
          _
        // Predicated region
        $region77: #{tpu_custom_call.1} parent=15 // pred_check
          %p725 = pneg %p467
        $region78: #{tpu_custom_call.1} parent=15 // pred_check_branch
          %727 = sbr.rel (%p725) target = $region80
        $region79: #{tpu_custom_call.1} parent=15 // pred_region
          %p728 = scmp.lt.s32.totalorder %s44, 1
          %s729 = scalar_select %p728, %s44, 1
          %s730 = scalar_lea.vmem %s15, %s729
        $region80: #{tpu_custom_call.1} parent=15 // pred_fallthru
          _
        // Predicated region
        $region81: #{tpu_custom_call.1} parent=15 // pred_check
          %p731 = pneg %p493
        $region82: #{tpu_custom_call.1} parent=15 // pred_check_branch
          %733 = sbr.rel (%p731) target = $region84
        $region83: #{tpu_custom_call.1} parent=15 // pred_region
          %p734 = scmp.lt.s32.totalorder %s44, 1
          %s735 = scalar_select %p734, %s44, 1
          %s736 = scalar_lea.vmem %s16, %s735
        $region84: #{tpu_custom_call.1} parent=15 // pred_fallthru
          _
        // Predicated region
        $region85: #{tpu_custom_call.1} parent=15 // pred_check
          %p737 = pneg %p519
        $region86: #{tpu_custom_call.1} parent=15 // pred_check_branch
          %739 = sbr.rel (%p737) target = $region88
        $region87: #{tpu_custom_call.1} parent=15 // pred_region
          %p740 = scmp.lt.s32.totalorder %s44, 1
          %s741 = scalar_select %p740, %s44, 1
          %s742 = scalar_lea.vmem %s17, %s741
        $region88: #{tpu_custom_call.1} parent=15 // pred_fallthru
          _
      $region16: #{tpu_custom_call.1} parent=5 // pred_fallthru
        _
      %p743 = scmp.le.s32.totalorder 1, %s36
      %p744 = scmp.lt.s32.totalorder %s36, 5
      %p745 = pnand %p743, %p744
      %p746 = pneg %p745
      // Predicated region
      $region89: #{tpu_custom_call.1} parent=5 // pred_check
        _
      $region90: #{tpu_custom_call.1} parent=5 // pred_check_branch
        %748 = sbr.rel (%p745) target = $region92
      $region91: #{tpu_custom_call.1} parent=5 // pred_region
        %s749 = ssub.s32 %s36, 1
        %s750 = sand.u32 %s68, 1
        %s751 = scalar_lea.sflag [#allocation7], %s750
        %s752 = sand.u32 %s68, 1
        %s753 = smul.addr %s752, 8
        %s754 = scalar_lea.vmem [#allocation6], %s753
        // Predicated region
        $region93: #{tpu_custom_call.1} parent=91 // pred_check
          %p755 = pneg %p81
        $region94: #{tpu_custom_call.1} parent=91 // pred_check_branch
          %757 = sbr.rel (%p755) target = $region96
        $region95: #{tpu_custom_call.1} parent=91 // pred_region
          %758 = dma.done %s751, 128
        $region96: #{tpu_custom_call.1} parent=91 // pred_fallthru
          _
        %s759 = sand.u32 %s41, 1
        %s760 = scalar_lea.sflag [#allocation10], %s759
        %s761 = sand.u32 %s96, 1
        %s762 = smul.addr %s761, 4
        %s763 = scalar_lea.vmem [#allocation9], %s762
        // Predicated region
        $region97: #{tpu_custom_call.1} parent=91 // pred_check
          %p764 = pneg %p109
        $region98: #{tpu_custom_call.1} parent=91 // pred_check_branch
          %766 = sbr.rel (%p764) target = $region100
        $region99: #{tpu_custom_call.1} parent=91 // pred_region
          %767 = dma.done %s760, 64
        $region100: #{tpu_custom_call.1} parent=91 // pred_fallthru
          _
        %s768 = sand.u32 %s41, 1
        %s769 = scalar_lea.sflag [#allocation10], %s768
        %s770 = sand.u32 %s278, 1
        %s771 = smul.addr %s770, 16
        %s772 = scalar_lea.vmem [#allocation11], %s771
        // Predicated region
        $region101: #{tpu_custom_call.1} parent=91 // pred_check
          %p773 = pneg %p291
        $region102: #{tpu_custom_call.1} parent=91 // pred_check_branch
          %775 = sbr.rel (%p773) target = $region104
        $region103: #{tpu_custom_call.1} parent=91 // pred_region
          %776 = dma.done %s769, 256
        $region104: #{tpu_custom_call.1} parent=91 // pred_fallthru
          _
        %s777 = sand.u32 %s382, 1
        %s778 = scalar_lea.sflag [#allocation13], %s777
        %s779 = sand.u32 %s382, 1
        %s780 = smul.addr %s779, 16
        %s781 = scalar_lea.vmem [#allocation12], %s780
        // Predicated region
        $region105: #{tpu_custom_call.1} parent=91 // pred_check
          %p782 = pneg %p395
        $region106: #{tpu_custom_call.1} parent=91 // pred_check_branch
          %784 = sbr.rel (%p782) target = $region108
        $region107: #{tpu_custom_call.1} parent=91 // pred_region
          %785 = dma.done %s778, 256
        $region108: #{tpu_custom_call.1} parent=91 // pred_fallthru
          _
        %s786 = sand.u32 %s68, 1
        %s787 = scalar_lea.sflag [#allocation7], %s786
        %s788 = sand.u32 %s68, 1
        %s789 = smul.addr %s788, 8
        %s790 = scalar_lea.vmem [#allocation6], %s789
        %p791 = pneg %p81
        %p792 = pneg %p78
        %s793 = sand.u32 %s41, 1
        %s794 = scalar_lea.sflag [#allocation10], %s793
        %s795 = sand.u32 %s96, 1
        %s796 = smul.addr %s795, 4
        %s797 = scalar_lea.vmem [#allocation9], %s796
        %p798 = pneg %p109
        %p799 = pneg %p106
        %p800 = scmp.lt.s32.totalorder %s47, 1
        %s801 = scalar_select %p800, %s47, 1
        %s802 = smul.addr %s801, 4
        %s803 = smul.addr %s802, 4
        %s804 = scalar_lea.vmem %s2, %s803
        %p805 = pneg %p135
        %p806 = pneg %p132
        %p807 = scmp.lt.s32.totalorder %s47, 1
        %s808 = scalar_select %p807, %s47, 1
        %s809 = scalar_lea.vmem %s3, %s808
        %p810 = pneg %p161
        %p811 = pneg %p158
        %p812 = scmp.lt.s32.totalorder %s47, 1
        %s813 = scalar_select %p812, %s47, 1
        %s814 = smul.addr %s813, 4
        %s815 = smul.addr %s814, 4
        %s816 = scalar_lea.vmem %s4, %s815
        %p817 = pneg %p187
        %p818 = pneg %p184
        %p819 = scmp.lt.s32.totalorder %s47, 1
        %s820 = scalar_select %p819, %s47, 1
        %s821 = scalar_lea.vmem %s5, %s820
        %p822 = pneg %p213
        %p823 = pneg %p210
        %p824 = scmp.lt.s32.totalorder %s47, 1
        %s825 = scalar_select %p824, %s47, 1
        %s826 = smul.addr %s825, 4
        %s827 = smul.addr %s826, 4
        %s828 = scalar_lea.vmem %s6, %s827
        %p829 = pneg %p239
        %p830 = pneg %p236
        %p831 = scmp.lt.s32.totalorder %s47, 1
        %s832 = scalar_select %p831, %s47, 1
        %s833 = scalar_lea.vmem %s7, %s832
        %p834 = pneg %p265
        %p835 = pneg %p262
        %s836 = sand.u32 %s41, 1
        %s837 = scalar_lea.sflag [#allocation10], %s836
        %s838 = sand.u32 %s278, 1
        %s839 = smul.addr %s838, 16
        %s840 = scalar_lea.vmem [#allocation11], %s839
        %p841 = pneg %p291
        %p842 = pneg %p288
        %p843 = scmp.lt.s32.totalorder %s47, 1
        %s844 = scalar_select %p843, %s47, 1
        %s845 = scalar_lea.vmem %s9, %s844
        %p846 = pneg %p317
        %p847 = pneg %p314
        %p848 = scmp.lt.s32.totalorder %s47, 1
        %s849 = scalar_select %p848, %s47, 1
        %s850 = scalar_lea.vmem %s10, %s849
        %p851 = pneg %p343
        %p852 = pneg %p340
        %p853 = scmp.lt.s32.totalorder %s47, 1
        %s854 = scalar_select %p853, %s47, 1
        %s855 = scalar_lea.vmem %s11, %s854
        %p856 = pneg %p369
        %p857 = pneg %p366
        %s858 = sand.u32 %s382, 1
        %s859 = scalar_lea.sflag [#allocation13], %s858
        %s860 = sand.u32 %s382, 1
        %s861 = smul.addr %s860, 16
        %s862 = scalar_lea.vmem [#allocation12], %s861
        %p863 = pneg %p395
        %p864 = pneg %p392
        %p865 = scmp.lt.s32.totalorder %s47, 1
        %s866 = scalar_select %p865, %s47, 1
        %s867 = scalar_lea.vmem %s13, %s866
        %p868 = pneg %p421
        %p869 = pneg %p418
        %p870 = scmp.lt.s32.totalorder %s47, 1
        %s871 = scalar_select %p870, %s47, 1
        %s872 = smul.addr %s871, 8
        %s873 = smul.addr %s872, 4
        %s874 = scalar_lea.vmem %s14, %s873
        %p875 = pneg %p447
        %p876 = pneg %p444
        %p877 = scmp.lt.s32.totalorder %s47, 1
        %s878 = scalar_select %p877, %s47, 1
        %s879 = scalar_lea.vmem %s15, %s878
        %p880 = pneg %p473
        %p881 = pneg %p470
        %p882 = scmp.lt.s32.totalorder %s47, 1
        %s883 = scalar_select %p882, %s47, 1
        %s884 = scalar_lea.vmem %s16, %s883
        %p885 = pneg %p499
        %p886 = pneg %p496
        %p887 = scmp.lt.s32.totalorder %s47, 1
        %s888 = scalar_select %p887, %s47, 1
        %s889 = scalar_lea.vmem %s17, %s888
        %p890 = pneg %p525
        %p891 = pneg %p522
        %p892 = pneg %p553
        %p893 = pneg %p550
        %s894 = sand.u32 %s540, 1
        %s895 = scalar_lea.sflag [#allocation8], %s894
        %s896 = sand.u32 %s540, 1
        %s897 = smul.addr %s896, 8
        %s898 = scalar_lea.vmem [#allocation14], %s897
        %p899 = scmp.lt.s32.totalorder %s47, 1
        %s900 = scalar_select %p899, %s47, 1
        %s901 = smul.addr %s900, 4
        %s902 = smul.addr %s901, 4
        %s903 = scalar_lea.vmem %s2, %s902
        %p904 = scmp.lt.s32.totalorder %s47, 1
        %s905 = scalar_select %p904, %s47, 1
        %s906 = scalar_lea.vmem %s3, %s905
        %p907 = scmp.lt.s32.totalorder %s47, 1
        %s908 = scalar_select %p907, %s47, 1
        %s909 = smul.addr %s908, 4
        %s910 = smul.addr %s909, 4
        %s911 = scalar_lea.vmem %s4, %s910
        %p912 = scmp.lt.s32.totalorder %s47, 1
        %s913 = scalar_select %p912, %s47, 1
        %s914 = scalar_lea.vmem %s5, %s913
        %p915 = scmp.lt.s32.totalorder %s47, 1
        %s916 = scalar_select %p915, %s47, 1
        %s917 = smul.addr %s916, 4
        %s918 = smul.addr %s917, 4
        %s919 = scalar_lea.vmem %s6, %s918
        %p920 = scmp.lt.s32.totalorder %s47, 1
        %s921 = scalar_select %p920, %s47, 1
        %s922 = scalar_lea.vmem %s7, %s921
        %p923 = scmp.lt.s32.totalorder %s47, 1
        %s924 = scalar_select %p923, %s47, 1
        %s925 = scalar_lea.vmem %s9, %s924
        %p926 = scmp.lt.s32.totalorder %s47, 1
        %s927 = scalar_select %p926, %s47, 1
        %s928 = scalar_lea.vmem %s10, %s927
        %p929 = scmp.lt.s32.totalorder %s47, 1
        %s930 = scalar_select %p929, %s47, 1
        %s931 = scalar_lea.vmem %s11, %s930
        %p932 = scmp.lt.s32.totalorder %s47, 1
        %s933 = scalar_select %p932, %s47, 1
        %s934 = scalar_lea.vmem %s13, %s933
        %p935 = scmp.lt.s32.totalorder %s47, 1
        %s936 = scalar_select %p935, %s47, 1
        %s937 = smul.addr %s936, 8
        %s938 = smul.addr %s937, 4
        %s939 = scalar_lea.vmem %s14, %s938
        %p940 = scmp.lt.s32.totalorder %s47, 1
        %s941 = scalar_select %p940, %s47, 1
        %s942 = scalar_lea.vmem %s15, %s941
        %p943 = scmp.lt.s32.totalorder %s47, 1
        %s944 = scalar_select %p943, %s47, 1
        %s945 = scalar_lea.vmem %s16, %s944
        %p946 = scmp.lt.s32.totalorder %s47, 1
        %s947 = scalar_select %p946, %s47, 1
        %s948 = scalar_lea.vmem %s17, %s947
        %p950 = scmp.eq.s32.totalorder %s47, 0
        %p951 = scmp.eq.s32.totalorder %s48, 0
        %p952 = pnand %p950, %p951
        %p953 = pneg %p952
        // Predicated region
        $region109: #{tpu_custom_call.1} parent=91 // pred_check
          _
        $region110: #{tpu_custom_call.1} parent=91 // pred_check_branch
          %955 = sbr.rel (%p952) target = $region112
        $region111: #{tpu_custom_call.1} parent=91 // pred_region
          %v956 = vld [vmem:[%s754] sm:$0xff]
          %vm957 = vcmask 261120
          %958 = vst.msk [vmem:[#allocation2] sm:$0xff] %vm957, %v956
        $region112: #{tpu_custom_call.1} parent=91 // pred_fallthru
          _
        // Predicated region
        $region113: #{tpu_custom_call.1} parent=91 // pred_check
          %p959 = pneg %p951
        $region114: #{tpu_custom_call.1} parent=91 // pred_check_branch
          %961 = sbr.rel (%p959) target = $region116
        $region115: #{tpu_custom_call.1} parent=91 // pred_region
          %v962 = vld [vmem:[#allocation2] sm:$0xff]
          %v963 = vpack.c.bf16 %v962, %v962
          %v964 = vld [vmem:[%s911] sm:$0xf]
          %v965 = vld [vmem:[%s911 + $0x4] sm:$0xf]
          %v966 = vld [vmem:[%s911 + $0x8] sm:$0xf]
          %v967 = vld [vmem:[%s911 + $0xc] sm:$0xf]
          %v968 = vld [vmem:[%s914] sm:$0x1]
          %v970 = vlaneseq
          %v971 = vshrl.u32 %v970, 7
          %v972 = vsub.s32 0, %v971
          %v973 = vrot.slane %v968, %v972
          %v979 = vunpack.c.l.b16 %v964
          %v980 = vunpack.c.l.b16 %v965
          %v981 = vunpack.c.l.b16 %v966
          %v982 = vunpack.c.l.b16 %v967
          %v983 = vpack.c.b16 %v980, %v979
          %v984 = vpack.c.b16 %v982, %v981
          %vm987 = vcmask 261120
          %v989 = vsel %vm987, %v963, 0
          %991 = vmatprep.subr.bf16.mxu0 0
          %992 = vmatpush1.bf16.msra.mxu0 %v983
          %993 = vmatprep.subr.bf16.mxu0 0
          %994 = vmatpush1.bf16.msra.mxu0 %v984
          %995 = vmatprep.subr.bf16.mxu0 0
          %996 = vmatpush1.bf16.msra.mxu0 0
          %997 = vmatprep.subr.bf16.mxu0 0
          %998 = vmatpush1.bf16.msra.mxu0 0
          %999 = vmatprep.subr.bf16.mxu0 0
          %1000 = vmatpush1.bf16.msra.mxu0 0
          %1001 = vmatprep.subr.bf16.mxu0 0
          %1002 = vmatpush1.bf16.msra.mxu0 0
          %1003 = vmatprep.subr.bf16.mxu0 0
          %1004 = vmatpush1.bf16.msra.mxu0 0
          %1005 = vmatprep.subr.bf16.mxu0 0
          %1006 = vmatpush1.bf16.msra.mxu0 0
          %1007 = vmatprep.subr.bf16.mxu0 0
          %1008 = vmatpush1.bf16.msra.mxu0 0
          %1009 = vmatprep.subr.bf16.mxu0 0
          %1010 = vmatpush1.bf16.msra.mxu0 0
          %1011 = vmatprep.subr.bf16.mxu0 0
          %1012 = vmatpush1.bf16.msra.mxu0 0
          %1013 = vmatprep.subr.bf16.mxu0 0
          %1014 = vmatpush1.bf16.msra.mxu0 0
          %1015 = vmatprep.subr.bf16.mxu0 0
          %1016 = vmatpush1.bf16.msra.mxu0 0
          %1017 = vmatprep.subr.bf16.mxu0 0
          %1018 = vmatpush1.bf16.msra.mxu0 0
          %1019 = vmatprep.subr.bf16.mxu0 0
          %1020 = vmatpush1.bf16.msra.mxu0 0
          %1021 = vmatprep.subr.bf16.mxu0 0
          %1022 = vmatpush1.bf16.msra.mxu0 0
          %1023 = vmatprep.mubr.bf16.mxu0 0
          %1024 = vmatmul.mubr.bf16.gmra.mrb[0].mxu0 %v989
          %v1025 = vpop.f32.mrb[0].mxu0
          %v1026 = vadd.f32 %v973, %v1025
          %v1027 = vpop.f32.mrb[0].mxu0
          %v1028 = vpop.f32.mrb[0].mxu0
          %v1029 = vpop.f32.mrb[0].mxu0
          %1030 = vdwg.mxu0
          %v1031 = vld [vmem:[%s919] sm:$0xf]
          %v1032 = vld [vmem:[%s919 + $0x4] sm:$0xf]
          %v1033 = vld [vmem:[%s919 + $0x8] sm:$0xf]
          %v1034 = vld [vmem:[%s919 + $0xc] sm:$0xf]
          %v1035 = vld [vmem:[%s922] sm:$0x1]
          %v1037 = vlaneseq
          %v1038 = vshrl.u32 %v1037, 7
          %v1039 = vsub.s32 0, %v1038
          %v1040 = vrot.slane %v1035, %v1039
          %v1046 = vunpack.c.l.b16 %v1031
          %v1047 = vunpack.c.l.b16 %v1032
          %v1048 = vunpack.c.l.b16 %v1033
          %v1049 = vunpack.c.l.b16 %v1034
          %v1050 = vpack.c.b16 %v1047, %v1046
          %v1051 = vpack.c.b16 %v1049, %v1048
          %1054 = vmatprep.subr.bf16.mxu0 0
          %1055 = vmatpush1.bf16.msra.mxu0 %v1050
          %1056 = vmatprep.subr.bf16.mxu0 0
          %1057 = vmatpush1.bf16.msra.mxu0 %v1051
          %1058 = vmatprep.subr.bf16.mxu0 0
          %1059 = vmatpush1.bf16.msra.mxu0 0
          %1060 = vmatprep.subr.bf16.mxu0 0
          %1061 = vmatpush1.bf16.msra.mxu0 0
          %1062 = vmatprep.subr.bf16.mxu0 0
          %1063 = vmatpush1.bf16.msra.mxu0 0
          %1064 = vmatprep.subr.bf16.mxu0 0
          %1065 = vmatpush1.bf16.msra.mxu0 0
          %1066 = vmatprep.subr.bf16.mxu0 0
          %1067 = vmatpush1.bf16.msra.mxu0 0
          %1068 = vmatprep.subr.bf16.mxu0 0
          %1069 = vmatpush1.bf16.msra.mxu0 0
          %1070 = vmatprep.subr.bf16.mxu0 0
          %1071 = vmatpush1.bf16.msra.mxu0 0
          %1072 = vmatprep.subr.bf16.mxu0 0
          %1073 = vmatpush1.bf16.msra.mxu0 0
          %1074 = vmatprep.subr.bf16.mxu0 0
          %1075 = vmatpush1.bf16.msra.mxu0 0
          %1076 = vmatprep.subr.bf16.mxu0 0
          %1077 = vmatpush1.bf16.msra.mxu0 0
          %1078 = vmatprep.subr.bf16.mxu0 0
          %1079 = vmatpush1.bf16.msra.mxu0 0
          %1080 = vmatprep.subr.bf16.mxu0 0
          %1081 = vmatpush1.bf16.msra.mxu0 0
          %1082 = vmatprep.subr.bf16.mxu0 0
          %1083 = vmatpush1.bf16.msra.mxu0 0
          %1084 = vmatprep.subr.bf16.mxu0 0
          %1085 = vmatpush1.bf16.msra.mxu0 0
          %1086 = vmatprep.mubr.bf16.mxu0 0
          %1087 = vmatmul.mubr.bf16.gmra.mrb[0].mxu0 %v989
          %v1088 = vpop.f32.mrb[0].mxu0
          %v1089 = vadd.f32 %v1040, %v1088
          %v1090 = vpop.f32.mrb[0].mxu0
          %v1091 = vpop.f32.mrb[0].mxu0
          %v1092 = vpop.f32.mrb[0].mxu0
          %1093 = vdwg.mxu0
          %v1094 = vpack.c.bf16 %v1026, %v1026
          %vm1095 = vcmask 257024
          %1096 = vst.msk [vmem:[#allocation3] sm:$0xf] %vm1095, %v1094
          %v1097 = vpack.c.bf16 %v1089, %v1089
          %1098 = vst.msk [vmem:[#allocation4] sm:$0xf] %vm1095, %v1097
        $region116: #{tpu_custom_call.1} parent=91 // pred_fallthru
          _
        %s1099 = smul.u32 %s48, 8
        %s1100 = scalar_lea.vmem [#allocation2], %s1099
        %v1101 = vld [vmem:[%s1100] sm:$0xff]
        %v1102 = vpack.c.bf16 %v1101, %v1101
        %v1103 = vld [vmem:[%s903] sm:$0xf]
        %v1104 = vld [vmem:[%s903 + $0x4] sm:$0xf]
        %v1105 = vld [vmem:[%s903 + $0x8] sm:$0xf]
        %v1106 = vld [vmem:[%s903 + $0xc] sm:$0xf]
        %v1107 = vld [vmem:[%s906] sm:$0x1]
        %v1109 = vlaneseq
        %v1110 = vshrl.u32 %v1109, 7
        %v1111 = vsub.s32 0, %v1110
        %v1112 = vrot.slane %v1107, %v1111
        %v1118 = vunpack.c.l.b16 %v1103
        %v1119 = vunpack.c.l.b16 %v1104
        %v1120 = vunpack.c.l.b16 %v1105
        %v1121 = vunpack.c.l.b16 %v1106
        %v1122 = vpack.c.b16 %v1119, %v1118
        %v1123 = vpack.c.b16 %v1121, %v1120
        %vm1126 = vcmask 261120
        %v1128 = vsel %vm1126, %v1102, 0
        %1130 = vmatprep.subr.bf16.mxu0 0
        %1131 = vmatpush1.bf16.msra.mxu0 %v1122
        %1132 = vmatprep.subr.bf16.mxu0 0
        %1133 = vmatpush1.bf16.msra.mxu0 %v1123
        %1134 = vmatprep.subr.bf16.mxu0 0
        %1135 = vmatpush1.bf16.msra.mxu0 0
        %1136 = vmatprep.subr.bf16.mxu0 0
        %1137 = vmatpush1.bf16.msra.mxu0 0
        %1138 = vmatprep.subr.bf16.mxu0 0
        %1139 = vmatpush1.bf16.msra.mxu0 0
        %1140 = vmatprep.subr.bf16.mxu0 0
        %1141 = vmatpush1.bf16.msra.mxu0 0
        %1142 = vmatprep.subr.bf16.mxu0 0
        %1143 = vmatpush1.bf16.msra.mxu0 0
        %1144 = vmatprep.subr.bf16.mxu0 0
        %1145 = vmatpush1.bf16.msra.mxu0 0
        %1146 = vmatprep.subr.bf16.mxu0 0
        %1147 = vmatpush1.bf16.msra.mxu0 0
        %1148 = vmatprep.subr.bf16.mxu0 0
        %1149 = vmatpush1.bf16.msra.mxu0 0
        %1150 = vmatprep.subr.bf16.mxu0 0
        %1151 = vmatpush1.bf16.msra.mxu0 0
        %1152 = vmatprep.subr.bf16.mxu0 0
        %1153 = vmatpush1.bf16.msra.mxu0 0
        %1154 = vmatprep.subr.bf16.mxu0 0
        %1155 = vmatpush1.bf16.msra.mxu0 0
        %1156 = vmatprep.subr.bf16.mxu0 0
        %1157 = vmatpush1.bf16.msra.mxu0 0
        %1158 = vmatprep.subr.bf16.mxu0 0
        %1159 = vmatpush1.bf16.msra.mxu0 0
        %1160 = vmatprep.subr.bf16.mxu0 0
        %1161 = vmatpush1.bf16.msra.mxu0 0
        %1162 = vmatprep.mubr.bf16.mxu0 0
        %1163 = vmatmul.mubr.bf16.gmra.mrb[0].mxu0 %v1128
        %v1164 = vpop.f32.mrb[0].mxu0
        %v1165 = vadd.f32 %v1112, %v1164
        %v1166 = vpop.f32.mrb[0].mxu0
        %v1167 = vpop.f32.mrb[0].mxu0
        %v1168 = vpop.f32.mrb[0].mxu0
        %1169 = vdwg.mxu0
        %v1170 = vpack.c.bf16 %v1165, %v1165
        %v1171 = vld [vmem:[#allocation3] sm:$0xf]
        %v1172 = vld [vmem:[#allocation4] sm:$0xf]
        %v1173 = vld [vmem:[%s763] sm:$0xf]
        %v1174 = vunpack.c.l.bf16 %v1173
        %vm1175 = vcmask 64512
        %v1177 = vsel %vm1175, %v1170, 0
        %v1180 = vsel %vm1175, %v1171, 0
        %1182 = vmatprep.subr.bf16.mxu0 0
        %1183 = vmatpush1.bf16.xpose.msra.mxu0 %v1180
        %1184 = vmatprep.subr.bf16.mxu0 0
        %1185 = vmatpush1.bf16.xpose.msra.mxu0 0
        %1186 = vmatprep.subr.bf16.mxu0 0
        %1187 = vmatpush1.bf16.xpose.msra.mxu0 0
        %1188 = vmatprep.subr.bf16.mxu0 0
        %1189 = vmatpush1.bf16.xpose.msra.mxu0 0
        %1190 = vmatprep.subr.bf16.mxu0 0
        %1191 = vmatpush1.bf16.xpose.msra.mxu0 0
        %1192 = vmatprep.subr.bf16.mxu0 0
        %1193 = vmatpush1.bf16.xpose.msra.mxu0 0
        %1194 = vmatprep.subr.bf16.mxu0 0
        %1195 = vmatpush1.bf16.xpose.msra.mxu0 0
        %1196 = vmatprep.subr.bf16.mxu0 0
        %1197 = vmatpush1.bf16.xpose.msra.mxu0 0
        %1198 = vmatprep.subr.bf16.mxu0 0
        %1199 = vmatpush1.bf16.xpose.msra.mxu0 0
        %1200 = vmatprep.subr.bf16.mxu0 0
        %1201 = vmatpush1.bf16.xpose.msra.mxu0 0
        %1202 = vmatprep.subr.bf16.mxu0 0
        %1203 = vmatpush1.bf16.xpose.msra.mxu0 0
        %1204 = vmatprep.subr.bf16.mxu0 0
        %1205 = vmatpush1.bf16.xpose.msra.mxu0 0
        %1206 = vmatprep.subr.bf16.mxu0 0
        %1207 = vmatpush1.bf16.xpose.msra.mxu0 0
        %1208 = vmatprep.subr.bf16.mxu0 0
        %1209 = vmatpush1.bf16.xpose.msra.mxu0 0
        %1210 = vmatprep.subr.bf16.mxu0 0
        %1211 = vmatpush1.bf16.xpose.msra.mxu0 0
        %1212 = vmatprep.subr.bf16.mxu0 0
        %1213 = vmatpush1.bf16.xpose.msra.mxu0 0
        %1214 = vmatprep.mubr.bf16.mxu0 0
        %1215 = vmatmul.mubr.bf16.gmra.mrb[0].mxu0 %v1177
        %v1216 = vpop.f32.mrb[0].mxu0
        %v1217 = vadd.f32 0.0, %v1216
        %v1218 = vpop.f32.mrb[0].mxu0
        %v1219 = vpop.f32.mrb[0].mxu0
        %v1220 = vpop.f32.mrb[0].mxu0
        %1221 = vdwg.mxu0
        %v1222 = vmul.f32 %v1217, 0.35355338
        %v1223 = vadd.f32 %v1222, %v1174
        %v1224 = vsel %vm1175, %v1223, -inf
        %1225 = vmax.xlane.f32.xlu0 %v1224
        %v1226 = vpop.xlane.xlu0 %1225
        %v1227 = vsub.f32 %v1223, %v1226
        %v1228 = vmul.f32 %v1227, 1.442695
        %v1229 = vpow.pop %v1228
        %v1230 = vsel %vm1175, %v1229, 0.0
        %1231 = vadd.xlane.f32.xlu0 %v1230
        %v1232 = vpop.xlane.xlu0 %1231
        %v1233 = vrcp.pop %v1232
        %v1234 = vmul.f32 %v1229, %v1233
        %v1235 = vpack.c.bf16 %v1234, %v1234
        %v1237 = vsel %vm1175, %v1235, 0
        %vm1239 = vcmask 1043456
        %v1241 = vsel %vm1239, %v1172, 0
        %1243 = vmatprep.subr.bf16.mxu0 0
        %1244 = vmatpush1.bf16.msra.mxu0 %v1241
        %1245 = vmatprep.subr.bf16.mxu0 0
        %1246 = vmatpush1.bf16.msra.mxu0 0
        %1247 = vmatprep.subr.bf16.mxu0 0
        %1248 = vmatpush1.bf16.msra.mxu0 0
        %1249 = vmatprep.subr.bf16.mxu0 0
        %1250 = vmatpush1.bf16.msra.mxu0 0
        %1251 = vmatprep.subr.bf16.mxu0 0
        %1252 = vmatpush1.bf16.msra.mxu0 0
        %1253 = vmatprep.subr.bf16.mxu0 0
        %1254 = vmatpush1.bf16.msra.mxu0 0
        %1255 = vmatprep.subr.bf16.mxu0 0
        %1256 = vmatpush1.bf16.msra.mxu0 0
        %1257 = vmatprep.subr.bf16.mxu0 0
        %1258 = vmatpush1.bf16.msra.mxu0 0
        %1259 = vmatprep.subr.bf16.mxu0 0
        %1260 = vmatpush1.bf16.msra.mxu0 0
        %1261 = vmatprep.subr.bf16.mxu0 0
        %1262 = vmatpush1.bf16.msra.mxu0 0
        %1263 = vmatprep.subr.bf16.mxu0 0
        %1264 = vmatpush1.bf16.msra.mxu0 0
        %1265 = vmatprep.subr.bf16.mxu0 0
        %1266 = vmatpush1.bf16.msra.mxu0 0
        %1267 = vmatprep.subr.bf16.mxu0 0
        %1268 = vmatpush1.bf16.msra.mxu0 0
        %1269 = vmatprep.subr.bf16.mxu0 0
        %1270 = vmatpush1.bf16.msra.mxu0 0
        %1271 = vmatprep.subr.bf16.mxu0 0
        %1272 = vmatpush1.bf16.msra.mxu0 0
        %1273 = vmatprep.subr.bf16.mxu0 0
        %1274 = vmatpush1.bf16.msra.mxu0 0
        %1275 = vmatprep.mubr.bf16.mxu0 0
        %1276 = vmatmul.mubr.bf16.gmra.mrb[0].mxu0 %v1237
        %v1277 = vpop.f32.mrb[0].mxu0
        %v1278 = vadd.f32 0.0, %v1277
        %v1279 = vpop.f32.mrb[0].mxu0
        %v1280 = vpop.f32.mrb[0].mxu0
        %v1281 = vpop.f32.mrb[0].mxu0
        %1282 = vdwg.mxu0
        %1283 = vst.msk [vmem:[#allocation5] sm:$0xff] %vm1175, %v1278
        %1285 = vrot.lane.b32.xlu0 %v1170, 120
        %v1286 = vpop.permute.xlu0 %1285
        %v1288 = vunpack.c.l.b16 %v1171
        %v1289 = vpack.c.b16 %v1288, %v1288
        %1290 = vrot.lane.b32.xlu0 %v1289, 120
        %v1291 = vpop.permute.xlu0 %1290
        %v1293 = vsel %vm1175, %v1286, 0
        %v1296 = vsel %vm1175, %v1291, 0
        %1298 = vmatprep.subr.bf16.mxu0 0
        %1299 = vmatpush1.bf16.xpose.msra.mxu0 %v1296
        %1300 = vmatprep.subr.bf16.mxu0 0
        %1301 = vmatpush1.bf16.xpose.msra.mxu0 0
        %1302 = vmatprep.subr.bf16.mxu0 0
        %1303 = vmatpush1.bf16.xpose.msra.mxu0 0
        %1304 = vmatprep.subr.bf16.mxu0 0
        %1305 = vmatpush1.bf16.xpose.msra.mxu0 0
        %1306 = vmatprep.subr.bf16.mxu0 0
        %1307 = vmatpush1.bf16.xpose.msra.mxu0 0
        %1308 = vmatprep.subr.bf16.mxu0 0
        %1309 = vmatpush1.bf16.xpose.msra.mxu0 0
        %1310 = vmatprep.subr.bf16.mxu0 0
        %1311 = vmatpush1.bf16.xpose.msra.mxu0 0
        %1312 = vmatprep.subr.bf16.mxu0 0
        %1313 = vmatpush1.bf16.xpose.msra.mxu0 0
        %1314 = vmatprep.subr.bf16.mxu0 0
        %1315 = vmatpush1.bf16.xpose.msra.mxu0 0
        %1316 = vmatprep.subr.bf16.mxu0 0
        %1317 = vmatpush1.bf16.xpose.msra.mxu0 0
        %1318 = vmatprep.subr.bf16.mxu0 0
        %1319 = vmatpush1.bf16.xpose.msra.mxu0 0
        %1320 = vmatprep.subr.bf16.mxu0 0
        %1321 = vmatpush1.bf16.xpose.msra.mxu0 0
        %1322 = vmatprep.subr.bf16.mxu0 0
        %1323 = vmatpush1.bf16.xpose.msra.mxu0 0
        %1324 = vmatprep.subr.bf16.mxu0 0
        %1325 = vmatpush1.bf16.xpose.msra.mxu0 0
        %1326 = vmatprep.subr.bf16.mxu0 0
        %1327 = vmatpush1.bf16.xpose.msra.mxu0 0
        %1328 = vmatprep.subr.bf16.mxu0 0
        %1329 = vmatpush1.bf16.xpose.msra.mxu0 0
        %1330 = vmatprep.mubr.bf16.mxu0 0
        %1331 = vmatmul.mubr.bf16.gmra.mrb[0].mxu0 %v1293
        %v1332 = vpop.f32.mrb[0].mxu0
        %v1333 = vadd.f32 0.0, %v1332
        %v1334 = vpop.f32.mrb[0].mxu0
        %v1335 = vpop.f32.mrb[0].mxu0
        %v1336 = vpop.f32.mrb[0].mxu0
        %1337 = vdwg.mxu0
        %v1338 = vmul.f32 %v1333, 0.35355338
        %v1339 = vadd.f32 %v1338, %v1174
        %v1340 = vsel %vm1175, %v1339, -inf
        %1341 = vmax.xlane.f32.xlu0 %v1340
        %v1342 = vpop.xlane.xlu0 %1341
        %v1343 = vsub.f32 %v1339, %v1342
        %v1344 = vmul.f32 %v1343, 1.442695
        %v1345 = vpow.pop %v1344
        %v1346 = vsel %vm1175, %v1345, 0.0
        %1347 = vadd.xlane.f32.xlu0 %v1346
        %v1348 = vpop.xlane.xlu0 %1347
        %v1349 = vrcp.pop %v1348
        %v1350 = vmul.f32 %v1345, %v1349
        %v1351 = vpack.c.bf16 %v1350, %v1350
        %v1353 = vunpack.c.l.b16 %v1172
        %v1354 = vpack.c.b16 %v1353, %v1353
        %1355 = vrot.lane.b32.xlu0 %v1354, 120
        %v1356 = vpop.permute.xlu0 %1355
        %v1358 = vsel %vm1175, %v1351, 0
        %v1361 = vsel %vm1239, %v1356, 0
        %1363 = vmatprep.subr.bf16.mxu0 0
        %1364 = vmatpush1.bf16.msra.mxu0 %v1361
        %1365 = vmatprep.subr.bf16.mxu0 0
        %1366 = vmatpush1.bf16.msra.mxu0 0
        %1367 = vmatprep.subr.bf16.mxu0 0
        %1368 = vmatpush1.bf16.msra.mxu0 0
        %1369 = vmatprep.subr.bf16.mxu0 0
        %1370 = vmatpush1.bf16.msra.mxu0 0
        %1371 = vmatprep.subr.bf16.mxu0 0
        %1372 = vmatpush1.bf16.msra.mxu0 0
        %1373 = vmatprep.subr.bf16.mxu0 0
        %1374 = vmatpush1.bf16.msra.mxu0 0
        %1375 = vmatprep.subr.bf16.mxu0 0
        %1376 = vmatpush1.bf16.msra.mxu0 0
        %1377 = vmatprep.subr.bf16.mxu0 0
        %1378 = vmatpush1.bf16.msra.mxu0 0
        %1379 = vmatprep.subr.bf16.mxu0 0
        %1380 = vmatpush1.bf16.msra.mxu0 0
        %1381 = vmatprep.subr.bf16.mxu0 0
        %1382 = vmatpush1.bf16.msra.mxu0 0
        %1383 = vmatprep.subr.bf16.mxu0 0
        %1384 = vmatpush1.bf16.msra.mxu0 0
        %1385 = vmatprep.subr.bf16.mxu0 0
        %1386 = vmatpush1.bf16.msra.mxu0 0
        %1387 = vmatprep.subr.bf16.mxu0 0
        %1388 = vmatpush1.bf16.msra.mxu0 0
        %1389 = vmatprep.subr.bf16.mxu0 0
        %1390 = vmatpush1.bf16.msra.mxu0 0
        %1391 = vmatprep.subr.bf16.mxu0 0
        %1392 = vmatpush1.bf16.msra.mxu0 0
        %1393 = vmatprep.subr.bf16.mxu0 0
        %1394 = vmatpush1.bf16.msra.mxu0 0
        %1395 = vmatprep.mubr.bf16.mxu0 0
        %1396 = vmatmul.mubr.bf16.gmra.mrb[0].mxu0 %v1358
        %v1397 = vpop.f32.mrb[0].mxu0
        %v1398 = vadd.f32 0.0, %v1397
        %v1399 = vpop.f32.mrb[0].mxu0
        %v1400 = vpop.f32.mrb[0].mxu0
        %v1401 = vpop.f32.mrb[0].mxu0
        %1402 = vdwg.mxu0
        %1404 = vrot.lane.b32.xlu0 %v1398, 8
        %v1405 = vpop.permute.xlu0 %1404
        %vm1407 = vcmask 130112
        %1408 = vst.msk [vmem:[#allocation5] sm:$0xff] %vm1407, %v1405
        %1409 = vrot.lane.b32.xlu0 %v1170, 112
        %v1410 = vpop.permute.xlu0 %1409
        %1411 = vrot.lane.b32.xlu0 %v1289, 112
        %v1412 = vpop.permute.xlu0 %1411
        %v1414 = vsel %vm1175, %v1410, 0
        %v1417 = vsel %vm1175, %v1412, 0
        %1419 = vmatprep.subr.bf16.mxu0 0
        %1420 = vmatpush1.bf16.xpose.msra.mxu0 %v1417
        %1421 = vmatprep.subr.bf16.mxu0 0
        %1422 = vmatpush1.bf16.xpose.msra.mxu0 0
        %1423 = vmatprep.subr.bf16.mxu0 0
        %1424 = vmatpush1.bf16.xpose.msra.mxu0 0
        %1425 = vmatprep.subr.bf16.mxu0 0
        %1426 = vmatpush1.bf16.xpose.msra.mxu0 0
        %1427 = vmatprep.subr.bf16.mxu0 0
        %1428 = vmatpush1.bf16.xpose.msra.mxu0 0
        %1429 = vmatprep.subr.bf16.mxu0 0
        %1430 = vmatpush1.bf16.xpose.msra.mxu0 0
        %1431 = vmatprep.subr.bf16.mxu0 0
        %1432 = vmatpush1.bf16.xpose.msra.mxu0 0
        %1433 = vmatprep.subr.bf16.mxu0 0
        %1434 = vmatpush1.bf16.xpose.msra.mxu0 0
        %1435 = vmatprep.subr.bf16.mxu0 0
        %1436 = vmatpush1.bf16.xpose.msra.mxu0 0
        %1437 = vmatprep.subr.bf16.mxu0 0
        %1438 = vmatpush1.bf16.xpose.msra.mxu0 0
        %1439 = vmatprep.subr.bf16.mxu0 0
        %1440 = vmatpush1.bf16.xpose.msra.mxu0 0
        %1441 = vmatprep.subr.bf16.mxu0 0
        %1442 = vmatpush1.bf16.xpose.msra.mxu0 0
        %1443 = vmatprep.subr.bf16.mxu0 0
        %1444 = vmatpush1.bf16.xpose.msra.mxu0 0
        %1445 = vmatprep.subr.bf16.mxu0 0
        %1446 = vmatpush1.bf16.xpose.msra.mxu0 0
        %1447 = vmatprep.subr.bf16.mxu0 0
        %1448 = vmatpush1.bf16.xpose.msra.mxu0 0
        %1449 = vmatprep.subr.bf16.mxu0 0
        %1450 = vmatpush1.bf16.xpose.msra.mxu0 0
        %1451 = vmatprep.mubr.bf16.mxu0 0
        %1452 = vmatmul.mubr.bf16.gmra.mrb[0].mxu0 %v1414
        %v1453 = vpop.f32.mrb[0].mxu0
        %v1454 = vadd.f32 0.0, %v1453
        %v1455 = vpop.f32.mrb[0].mxu0
        %v1456 = vpop.f32.mrb[0].mxu0
        %v1457 = vpop.f32.mrb[0].mxu0
        %1458 = vdwg.mxu0
        %v1459 = vmul.f32 %v1454, 0.35355338
        %v1460 = vadd.f32 %v1459, %v1174
        %v1461 = vsel %vm1175, %v1460, -inf
        %1462 = vmax.xlane.f32.xlu0 %v1461
        %v1463 = vpop.xlane.xlu0 %1462
        %v1464 = vsub.f32 %v1460, %v1463
        %v1465 = vmul.f32 %v1464, 1.442695
        %v1466 = vpow.pop %v1465
        %v1467 = vsel %vm1175, %v1466, 0.0
        %1468 = vadd.xlane.f32.xlu0 %v1467
        %v1469 = vpop.xlane.xlu0 %1468
        %v1470 = vrcp.pop %v1469
        %v1471 = vmul.f32 %v1466, %v1470
        %v1472 = vpack.c.bf16 %v1471, %v1471
        %1473 = vrot.lane.b32.xlu0 %v1354, 112
        %v1474 = vpop.permute.xlu0 %1473
        %v1476 = vsel %vm1175, %v1472, 0
        %v1479 = vsel %vm1239, %v1474, 0
        %1481 = vmatprep.subr.bf16.mxu0 0
        %1482 = vmatpush1.bf16.msra.mxu0 %v1479
        %1483 = vmatprep.subr.bf16.mxu0 0
        %1484 = vmatpush1.bf16.msra.mxu0 0
        %1485 = vmatprep.subr.bf16.mxu0 0
        %1486 = vmatpush1.bf16.msra.mxu0 0
        %1487 = vmatprep.subr.bf16.mxu0 0
        %1488 = vmatpush1.bf16.msra.mxu0 0
        %1489 = vmatprep.subr.bf16.mxu0 0
        %1490 = vmatpush1.bf16.msra.mxu0 0
        %1491 = vmatprep.subr.bf16.mxu0 0
        %1492 = vmatpush1.bf16.msra.mxu0 0
        %1493 = vmatprep.subr.bf16.mxu0 0
        %1494 = vmatpush1.bf16.msra.mxu0 0
        %1495 = vmatprep.subr.bf16.mxu0 0
        %1496 = vmatpush1.bf16.msra.mxu0 0
        %1497 = vmatprep.subr.bf16.mxu0 0
        %1498 = vmatpush1.bf16.msra.mxu0 0
        %1499 = vmatprep.subr.bf16.mxu0 0
        %1500 = vmatpush1.bf16.msra.mxu0 0
        %1501 = vmatprep.subr.bf16.mxu0 0
        %1502 = vmatpush1.bf16.msra.mxu0 0
        %1503 = vmatprep.subr.bf16.mxu0 0
        %1504 = vmatpush1.bf16.msra.mxu0 0
        %1505 = vmatprep.subr.bf16.mxu0 0
        %1506 = vmatpush1.bf16.msra.mxu0 0
        %1507 = vmatprep.subr.bf16.mxu0 0
        %1508 = vmatpush1.bf16.msra.mxu0 0
        %1509 = vmatprep.subr.bf16.mxu0 0
        %1510 = vmatpush1.bf16.msra.mxu0 0
        %1511 = vmatprep.subr.bf16.mxu0 0
        %1512 = vmatpush1.bf16.msra.mxu0 0
        %1513 = vmatprep.mubr.bf16.mxu0 0
        %1514 = vmatmul.mubr.bf16.gmra.mrb[0].mxu0 %v1476
        %v1515 = vpop.f32.mrb[0].mxu0
        %v1516 = vadd.f32 0.0, %v1515
        %v1517 = vpop.f32.mrb[0].mxu0
        %v1518 = vpop.f32.mrb[0].mxu0
        %v1519 = vpop.f32.mrb[0].mxu0
        %1520 = vdwg.mxu0
        %1522 = vrot.lane.b32.xlu0 %v1516, 16
        %v1523 = vpop.permute.xlu0 %1522
        %vm1525 = vcmask 195712
        %1526 = vst.msk [vmem:[#allocation5] sm:$0xff] %vm1525, %v1523
        %1527 = vrot.lane.b32.xlu0 %v1170, 104
        %v1528 = vpop.permute.xlu0 %1527
        %1529 = vrot.lane.b32.xlu0 %v1289, 104
        %v1530 = vpop.permute.xlu0 %1529
        %v1532 = vsel %vm1175, %v1528, 0
        %v1535 = vsel %vm1175, %v1530, 0
        %1537 = vmatprep.subr.bf16.mxu0 0
        %1538 = vmatpush1.bf16.xpose.msra.mxu0 %v1535
        %1539 = vmatprep.subr.bf16.mxu0 0
        %1540 = vmatpush1.bf16.xpose.msra.mxu0 0
        %1541 = vmatprep.subr.bf16.mxu0 0
        %1542 = vmatpush1.bf16.xpose.msra.mxu0 0
        %1543 = vmatprep.subr.bf16.mxu0 0
        %1544 = vmatpush1.bf16.xpose.msra.mxu0 0
        %1545 = vmatprep.subr.bf16.mxu0 0
        %1546 = vmatpush1.bf16.xpose.msra.mxu0 0
        %1547 = vmatprep.subr.bf16.mxu0 0
        %1548 = vmatpush1.bf16.xpose.msra.mxu0 0
        %1549 = vmatprep.subr.bf16.mxu0 0
        %1550 = vmatpush1.bf16.xpose.msra.mxu0 0
        %1551 = vmatprep.subr.bf16.mxu0 0
        %1552 = vmatpush1.bf16.xpose.msra.mxu0 0
        %1553 = vmatprep.subr.bf16.mxu0 0
        %1554 = vmatpush1.bf16.xpose.msra.mxu0 0
        %1555 = vmatprep.subr.bf16.mxu0 0
        %1556 = vmatpush1.bf16.xpose.msra.mxu0 0
        %1557 = vmatprep.subr.bf16.mxu0 0
        %1558 = vmatpush1.bf16.xpose.msra.mxu0 0
        %1559 = vmatprep.subr.bf16.mxu0 0
        %1560 = vmatpush1.bf16.xpose.msra.mxu0 0
        %1561 = vmatprep.subr.bf16.mxu0 0
        %1562 = vmatpush1.bf16.xpose.msra.mxu0 0
        %1563 = vmatprep.subr.bf16.mxu0 0
        %1564 = vmatpush1.bf16.xpose.msra.mxu0 0
        %1565 = vmatprep.subr.bf16.mxu0 0
        %1566 = vmatpush1.bf16.xpose.msra.mxu0 0
        %1567 = vmatprep.subr.bf16.mxu0 0
        %1568 = vmatpush1.bf16.xpose.msra.mxu0 0
        %1569 = vmatprep.mubr.bf16.mxu0 0
        %1570 = vmatmul.mubr.bf16.gmra.mrb[0].mxu0 %v1532
        %v1571 = vpop.f32.mrb[0].mxu0
        %v1572 = vadd.f32 0.0, %v1571
        %v1573 = vpop.f32.mrb[0].mxu0
        %v1574 = vpop.f32.mrb[0].mxu0
        %v1575 = vpop.f32.mrb[0].mxu0
        %1576 = vdwg.mxu0
        %v1577 = vmul.f32 %v1572, 0.35355338
        %v1578 = vadd.f32 %v1577, %v1174
        %v1579 = vsel %vm1175, %v1578, -inf
        %1580 = vmax.xlane.f32.xlu0 %v1579
        %v1581 = vpop.xlane.xlu0 %1580
        %v1582 = vsub.f32 %v1578, %v1581
        %v1583 = vmul.f32 %v1582, 1.442695
        %v1584 = vpow.pop %v1583
        %v1585 = vsel %vm1175, %v1584, 0.0
        %1586 = vadd.xlane.f32.xlu0 %v1585
        %v1587 = vpop.xlane.xlu0 %1586
        %v1588 = vrcp.pop %v1587
        %v1589 = vmul.f32 %v1584, %v1588
        %v1590 = vpack.c.bf16 %v1589, %v1589
        %1591 = vrot.lane.b32.xlu0 %v1354, 104
        %v1592 = vpop.permute.xlu0 %1591
        %v1594 = vsel %vm1175, %v1590, 0
        %v1597 = vsel %vm1239, %v1592, 0
        %1599 = vmatprep.subr.bf16.mxu0 0
        %1600 = vmatpush1.bf16.msra.mxu0 %v1597
        %1601 = vmatprep.subr.bf16.mxu0 0
        %1602 = vmatpush1.bf16.msra.mxu0 0
        %1603 = vmatprep.subr.bf16.mxu0 0
        %1604 = vmatpush1.bf16.msra.mxu0 0
        %1605 = vmatprep.subr.bf16.mxu0 0
        %1606 = vmatpush1.bf16.msra.mxu0 0
        %1607 = vmatprep.subr.bf16.mxu0 0
        %1608 = vmatpush1.bf16.msra.mxu0 0
        %1609 = vmatprep.subr.bf16.mxu0 0
        %1610 = vmatpush1.bf16.msra.mxu0 0
        %1611 = vmatprep.subr.bf16.mxu0 0
        %1612 = vmatpush1.bf16.msra.mxu0 0
        %1613 = vmatprep.subr.bf16.mxu0 0
        %1614 = vmatpush1.bf16.msra.mxu0 0
        %1615 = vmatprep.subr.bf16.mxu0 0
        %1616 = vmatpush1.bf16.msra.mxu0 0
        %1617 = vmatprep.subr.bf16.mxu0 0
        %1618 = vmatpush1.bf16.msra.mxu0 0
        %1619 = vmatprep.subr.bf16.mxu0 0
        %1620 = vmatpush1.bf16.msra.mxu0 0
        %1621 = vmatprep.subr.bf16.mxu0 0
        %1622 = vmatpush1.bf16.msra.mxu0 0
        %1623 = vmatprep.subr.bf16.mxu0 0
        %1624 = vmatpush1.bf16.msra.mxu0 0
        %1625 = vmatprep.subr.bf16.mxu0 0
        %1626 = vmatpush1.bf16.msra.mxu0 0
        %1627 = vmatprep.subr.bf16.mxu0 0
        %1628 = vmatpush1.bf16.msra.mxu0 0
        %1629 = vmatprep.subr.bf16.mxu0 0
        %1630 = vmatpush1.bf16.msra.mxu0 0
        %1631 = vmatprep.mubr.bf16.mxu0 0
        %1632 = vmatmul.mubr.bf16.gmra.mrb[0].mxu0 %v1594
        %v1633 = vpop.f32.mrb[0].mxu0
        %v1634 = vadd.f32 0.0, %v1633
        %v1635 = vpop.f32.mrb[0].mxu0
        %v1636 = vpop.f32.mrb[0].mxu0
        %v1637 = vpop.f32.mrb[0].mxu0
        %1638 = vdwg.mxu0
        %1640 = vrot.lane.b32.xlu0 %v1634, 24
        %v1641 = vpop.permute.xlu0 %1640
        %vm1643 = vcmask 261312
        %1644 = vst.msk [vmem:[#allocation5] sm:$0xff] %vm1643, %v1641
        %v1645 = vld [vmem:[#allocation5] sm:$0xff]
        %v1646 = vpack.c.bf16 %v1645, %v1645
        %v1647 = vld [vmem:[%s772] sm:$0xf]
        %v1648 = vld [vmem:[%s772 + $0x4] sm:$0xf]
        %v1649 = vld [vmem:[%s772 + $0x8] sm:$0xf]
        %v1650 = vld [vmem:[%s772 + $0xc] sm:$0xf]
        %v1651 = vld [vmem:[%s925] sm:$0x1]
        %v1653 = vlaneseq
        %v1654 = vshrl.u32 %v1653, 7
        %v1655 = vsub.s32 0, %v1654
        %v1656 = vrot.slane %v1651, %v1655
        %v1662 = vunpack.c.l.b16 %v1647
        %v1663 = vunpack.c.l.b16 %v1648
        %v1664 = vunpack.c.l.b16 %v1649
        %v1665 = vunpack.c.l.b16 %v1650
        %v1666 = vpack.c.b16 %v1663, %v1662
        %v1667 = vpack.c.b16 %v1665, %v1664
        %v1671 = vsel %vm1126, %v1646, 0
        %1673 = vmatprep.subr.bf16.mxu0 0
        %1674 = vmatpush1.bf16.msra.mxu0 %v1666
        %1675 = vmatprep.subr.bf16.mxu0 0
        %1676 = vmatpush1.bf16.msra.mxu0 %v1667
        %1677 = vmatprep.subr.bf16.mxu0 0
        %1678 = vmatpush1.bf16.msra.mxu0 0
        %1679 = vmatprep.subr.bf16.mxu0 0
        %1680 = vmatpush1.bf16.msra.mxu0 0
        %1681 = vmatprep.subr.bf16.mxu0 0
        %1682 = vmatpush1.bf16.msra.mxu0 0
        %1683 = vmatprep.subr.bf16.mxu0 0
        %1684 = vmatpush1.bf16.msra.mxu0 0
        %1685 = vmatprep.subr.bf16.mxu0 0
        %1686 = vmatpush1.bf16.msra.mxu0 0
        %1687 = vmatprep.subr.bf16.mxu0 0
        %1688 = vmatpush1.bf16.msra.mxu0 0
        %1689 = vmatprep.subr.bf16.mxu0 0
        %1690 = vmatpush1.bf16.msra.mxu0 0
        %1691 = vmatprep.subr.bf16.mxu0 0
        %1692 = vmatpush1.bf16.msra.mxu0 0
        %1693 = vmatprep.subr.bf16.mxu0 0
        %1694 = vmatpush1.bf16.msra.mxu0 0
        %1695 = vmatprep.subr.bf16.mxu0 0
        %1696 = vmatpush1.bf16.msra.mxu0 0
        %1697 = vmatprep.subr.bf16.mxu0 0
        %1698 = vmatpush1.bf16.msra.mxu0 0
        %1699 = vmatprep.subr.bf16.mxu0 0
        %1700 = vmatpush1.bf16.msra.mxu0 0
        %1701 = vmatprep.subr.bf16.mxu0 0
        %1702 = vmatpush1.bf16.msra.mxu0 0
        %1703 = vmatprep.subr.bf16.mxu0 0
        %1704 = vmatpush1.bf16.msra.mxu0 0
        %1705 = vmatprep.mubr.bf16.mxu0 0
        %1706 = vmatmul.mubr.bf16.gmra.mrb[0].mxu0 %v1671
        %v1707 = vpop.f32.mrb[0].mxu0
        %v1708 = vadd.f32 %v1656, %v1707
        %v1709 = vpop.f32.mrb[0].mxu0
        %v1710 = vpop.f32.mrb[0].mxu0
        %v1711 = vpop.f32.mrb[0].mxu0
        %1712 = vdwg.mxu0
        %v1713 = vadd.f32 %v1708, %v1101
        %v1714 = vsel %vm1126, %v1713, 0.0
        %1715 = vadd.xlane.f32.xlu0 %v1714
        %v1716 = vpop.xlane.xlu0 %1715
        %v1717 = vrcp.pop 32.0
        %v1718 = vmul.f32 %v1716, %v1717
        %v1719 = vsub.f32 %v1713, %v1718
        %v1720 = vmul.f32 %v1719, %v1719
        %v1721 = vsel %vm1126, %v1720, 0.0
        %1722 = vadd.xlane.f32.xlu0 %v1721
        %v1723 = vpop.xlane.xlu0 %1722
        %v1724 = vmul.f32 %v1723, %v1717
        %v1725 = vadd.f32 %v1724, 1e-12
        %v1726 = vrsqrt.pop %v1725
        %v1727 = vmul.f32 %v1719, %v1726
        %v1728 = vld [vmem:[%s928] sm:$0x1]
        %v1730 = vlaneseq
        %v1731 = vshrl.u32 %v1730, 7
        %v1732 = vsub.s32 0, %v1731
        %v1733 = vrot.slane %v1728, %v1732
        %v1735 = vmul.f32 %v1727, %v1733
        %v1736 = vld [vmem:[%s931] sm:$0x1]
        %v1738 = vlaneseq
        %v1739 = vshrl.u32 %v1738, 7
        %v1740 = vsub.s32 0, %v1739
        %v1741 = vrot.slane %v1736, %v1740
        %v1743 = vadd.f32 %v1735, %v1741
        %v1744 = vpack.c.bf16 %v1743, %v1743
        %v1745 = vld [vmem:[%s781] sm:$0xf]
        %v1746 = vld [vmem:[%s781 + $0x4] sm:$0xf]
        %v1747 = vld [vmem:[%s781 + $0x8] sm:$0xf]
        %v1748 = vld [vmem:[%s781 + $0xc] sm:$0xf]
        %v1749 = vld [vmem:[%s934] sm:$0x1]
        %v1751 = vlaneseq
        %v1752 = vshrl.u32 %v1751, 7
        %v1753 = vsub.s32 0, %v1752
        %v1754 = vrot.slane %v1749, %v1753
        %v1760 = vunpack.c.l.b16 %v1745
        %v1761 = vunpack.c.l.b16 %v1746
        %v1762 = vunpack.c.l.b16 %v1747
        %v1763 = vunpack.c.l.b16 %v1748
        %v1764 = vpack.c.b16 %v1761, %v1760
        %v1765 = vpack.c.b16 %v1763, %v1762
        %v1769 = vsel %vm1126, %v1744, 0
        %1771 = vmatprep.subr.bf16.mxu0 0
        %1772 = vmatpush1.bf16.msra.mxu0 %v1764
        %1773 = vmatprep.subr.bf16.mxu0 0
        %1774 = vmatpush1.bf16.msra.mxu0 %v1765
        %1775 = vmatprep.subr.bf16.mxu0 0
        %1776 = vmatpush1.bf16.msra.mxu0 0
        %1777 = vmatprep.subr.bf16.mxu0 0
        %1778 = vmatpush1.bf16.msra.mxu0 0
        %1779 = vmatprep.subr.bf16.mxu0 0
        %1780 = vmatpush1.bf16.msra.mxu0 0
        %1781 = vmatprep.subr.bf16.mxu0 0
        %1782 = vmatpush1.bf16.msra.mxu0 0
        %1783 = vmatprep.subr.bf16.mxu0 0
        %1784 = vmatpush1.bf16.msra.mxu0 0
        %1785 = vmatprep.subr.bf16.mxu0 0
        %1786 = vmatpush1.bf16.msra.mxu0 0
        %1787 = vmatprep.subr.bf16.mxu0 0
        %1788 = vmatpush1.bf16.msra.mxu0 0
        %1789 = vmatprep.subr.bf16.mxu0 0
        %1790 = vmatpush1.bf16.msra.mxu0 0
        %1791 = vmatprep.subr.bf16.mxu0 0
        %1792 = vmatpush1.bf16.msra.mxu0 0
        %1793 = vmatprep.subr.bf16.mxu0 0
        %1794 = vmatpush1.bf16.msra.mxu0 0
        %1795 = vmatprep.subr.bf16.mxu0 0
        %1796 = vmatpush1.bf16.msra.mxu0 0
        %1797 = vmatprep.subr.bf16.mxu0 0
        %1798 = vmatpush1.bf16.msra.mxu0 0
        %1799 = vmatprep.subr.bf16.mxu0 0
        %1800 = vmatpush1.bf16.msra.mxu0 0
        %1801 = vmatprep.subr.bf16.mxu0 0
        %1802 = vmatpush1.bf16.msra.mxu0 0
        %1803 = vmatprep.mubr.bf16.mxu0 0
        %1804 = vmatmul.mubr.bf16.gmra.mrb[0].mxu0 %v1769
        %v1805 = vpop.f32.mrb[0].mxu0
        %v1806 = vadd.f32 %v1754, %v1805
        %v1807 = vpop.f32.mrb[0].mxu0
        %v1808 = vpop.f32.mrb[0].mxu0
        %v1809 = vpop.f32.mrb[0].mxu0
        %1810 = vdwg.mxu0
        %v1811 = vmul.f32 %v1806, %v1806
        %v1812 = vmul.f32 %v1806, %v1811
        %v1813 = vmul.f32 %v1812, 0.044715
        %v1814 = vadd.f32 %v1806, %v1813
        %v1815 = vmul.f32 %v1814, 0.7978846
        %v1816 = vtanh.pop %v1815
        %v1817 = vadd.f32 %v1816, 1.0
        %v1818 = vmul.f32 %v1817, 0.5
        %v1819 = vmul.f32 %v1806, %v1818
        %v1820 = vpack.c.bf16 %v1819, %v1819
        %v1821 = vld [vmem:[%s939] sm:$0xf]
        %v1822 = vld [vmem:[%s939 + $0x4] sm:$0xf]
        %v1823 = vld [vmem:[%s939 + $0x8] sm:$0xf]
        %v1824 = vld [vmem:[%s939 + $0xc] sm:$0xf]
        %v1825 = vld [vmem:[%s939 + $0x10] sm:$0xf]
        %v1826 = vld [vmem:[%s939 + $0x14] sm:$0xf]
        %v1827 = vld [vmem:[%s939 + $0x18] sm:$0xf]
        %v1828 = vld [vmem:[%s939 + $0x1c] sm:$0xf]
        %v1829 = vld [vmem:[%s942] sm:$0x1]
        %v1831 = vlaneseq
        %v1832 = vshrl.u32 %v1831, 7
        %v1833 = vsub.s32 0, %v1832
        %v1834 = vrot.slane %v1829, %v1833
        %v1844 = vunpack.c.l.b16 %v1821
        %v1845 = vunpack.c.l.b16 %v1822
        %v1846 = vunpack.c.l.b16 %v1823
        %v1847 = vunpack.c.l.b16 %v1824
        %v1848 = vunpack.c.l.b16 %v1825
        %v1849 = vunpack.c.l.b16 %v1826
        %v1850 = vunpack.c.l.b16 %v1827
        %v1851 = vunpack.c.l.b16 %v1828
        %v1852 = vpack.c.b16 %v1845, %v1844
        %v1853 = vpack.c.b16 %v1847, %v1846
        %v1854 = vpack.c.b16 %v1849, %v1848
        %v1855 = vpack.c.b16 %v1851, %v1850
        %vm1860 = vcmask 523264
        %v1862 = vsel %vm1860, %v1820, 0
        %1864 = vmatprep.subr.bf16.mxu0 0
        %1865 = vmatpush1.bf16.msra.mxu0 %v1852
        %1866 = vmatprep.subr.bf16.mxu0 0
        %1867 = vmatpush1.bf16.msra.mxu0 %v1853
        %1868 = vmatprep.subr.bf16.mxu0 0
        %1869 = vmatpush1.bf16.msra.mxu0 %v1854
        %1870 = vmatprep.subr.bf16.mxu0 0
        %1871 = vmatpush1.bf16.msra.mxu0 %v1855
        %1872 = vmatprep.subr.bf16.mxu0 0
        %1873 = vmatpush1.bf16.msra.mxu0 0
        %1874 = vmatprep.subr.bf16.mxu0 0
        %1875 = vmatpush1.bf16.msra.mxu0 0
        %1876 = vmatprep.subr.bf16.mxu0 0
        %1877 = vmatpush1.bf16.msra.mxu0 0
        %1878 = vmatprep.subr.bf16.mxu0 0
        %1879 = vmatpush1.bf16.msra.mxu0 0
        %1880 = vmatprep.subr.bf16.mxu0 0
        %1881 = vmatpush1.bf16.msra.mxu0 0
        %1882 = vmatprep.subr.bf16.mxu0 0
        %1883 = vmatpush1.bf16.msra.mxu0 0
        %1884 = vmatprep.subr.bf16.mxu0 0
        %1885 = vmatpush1.bf16.msra.mxu0 0
        %1886 = vmatprep.subr.bf16.mxu0 0
        %1887 = vmatpush1.bf16.msra.mxu0 0
        %1888 = vmatprep.subr.bf16.mxu0 0
        %1889 = vmatpush1.bf16.msra.mxu0 0
        %1890 = vmatprep.subr.bf16.mxu0 0
        %1891 = vmatpush1.bf16.msra.mxu0 0
        %1892 = vmatprep.subr.bf16.mxu0 0
        %1893 = vmatpush1.bf16.msra.mxu0 0
        %1894 = vmatprep.subr.bf16.mxu0 0
        %1895 = vmatpush1.bf16.msra.mxu0 0
        %1896 = vmatprep.mubr.bf16.mxu0 0
        %1897 = vmatmul.mubr.bf16.gmra.mrb[0].mxu0 %v1862
        %v1898 = vpop.f32.mrb[0].mxu0
        %v1899 = vadd.f32 %v1834, %v1898
        %v1900 = vpop.f32.mrb[0].mxu0
        %v1901 = vpop.f32.mrb[0].mxu0
        %v1902 = vpop.f32.mrb[0].mxu0
        %1903 = vdwg.mxu0
        %v1904 = vadd.f32 %v1899, %v1743
        %v1905 = vsel %vm1126, %v1904, 0.0
        %1906 = vadd.xlane.f32.xlu0 %v1905
        %v1907 = vpop.xlane.xlu0 %1906
        %v1908 = vmul.f32 %v1907, %v1717
        %v1909 = vsub.f32 %v1904, %v1908
        %v1910 = vmul.f32 %v1909, %v1909
        %v1911 = vsel %vm1126, %v1910, 0.0
        %1912 = vadd.xlane.f32.xlu0 %v1911
        %v1913 = vpop.xlane.xlu0 %1912
        %v1914 = vmul.f32 %v1913, %v1717
        %v1915 = vadd.f32 %v1914, 1e-12
        %v1916 = vrsqrt.pop %v1915
        %v1917 = vmul.f32 %v1909, %v1916
        %v1918 = vld [vmem:[%s945] sm:$0x1]
        %v1920 = vlaneseq
        %v1921 = vshrl.u32 %v1920, 7
        %v1922 = vsub.s32 0, %v1921
        %v1923 = vrot.slane %v1918, %v1922
        %v1925 = vmul.f32 %v1917, %v1923
        %v1926 = vld [vmem:[%s948] sm:$0x1]
        %v1928 = vlaneseq
        %v1929 = vshrl.u32 %v1928, 7
        %v1930 = vsub.s32 0, %v1929
        %v1931 = vrot.slane %v1926, %v1930
        %v1933 = vadd.f32 %v1925, %v1931
        %1934 = vst.msk [vmem:[%s1100] sm:$0xff] %vm1126, %v1933
        %1935 = vst.msk [vmem:[%s898] sm:$0xff] %vm1126, %v1933
        %s1936 = sand.u32 %s540, 1
        %s1937 = scalar_lea.sflag [#allocation8], %s1936
        %s1938 = sand.u32 %s540, 1
        %s1939 = smul.addr %s1938, 8
        %s1940 = scalar_lea.vmem [#allocation14], %s1939
        // Predicated region
        $region117: #{tpu_custom_call.1} parent=91 // pred_check
          %p1941 = pneg %p550
        $region118: #{tpu_custom_call.1} parent=91 // pred_check_branch
          %1943 = sbr.rel (%p1941) target = $region120
        $region119: #{tpu_custom_call.1} parent=91 // pred_region
          %s1945 = ssub.s32 128, 128
          %1946 = vsyncadd %s1937, %s1945
          %s1947 = sadd.s32 %s48, %s46
          %s1948 = smul.addr %s1947, 128
          %s1949 = scalar_lea.hbm %s18, %s1948
          %s1951 = sshll.u32 %s1940, 4
          %s1952 = int_to_ptr.vmem [resolvable:$true] %s1951
          %1954 = dma.vmem_to_hbm [thread:$0]  %s1952, 128, %s1949, %s1937
        $region120: #{tpu_custom_call.1} parent=91 // pred_fallthru
          _
      $region92: #{tpu_custom_call.1} parent=5 // pred_fallthru
        _
      %p1955 = scmp.le.s32.totalorder 2, %s36
      // Predicated region
      $region121: #{tpu_custom_call.1} parent=5 // pred_check
        %p1956 = pneg %p1955
      $region122: #{tpu_custom_call.1} parent=5 // pred_check_branch
        %1958 = sbr.rel (%p1956) target = $region124
      $region123: #{tpu_custom_call.1} parent=5 // pred_region
        %s1959 = ssub.s32 %s36, 2
        // Predicated region
        $region125: #{tpu_custom_call.1} parent=123 // pred_check
          %p1960 = pneg %p556
        $region126: #{tpu_custom_call.1} parent=123 // pred_check_branch
          %1962 = sbr.rel (%p1960) target = $region128
        $region127: #{tpu_custom_call.1} parent=123 // pred_region
          %s1963 = sand.u32 %s541, 1
          %s1964 = scalar_lea.sflag [#allocation8], %s1963
          %s1965 = sand.u32 %s541, 1
          %s1966 = smul.addr %s1965, 8
          %s1967 = scalar_lea.vmem [#allocation14], %s1966
          %1968 = dma.done %s1964, 128
        $region128: #{tpu_custom_call.1} parent=123 // pred_fallthru
          _
      $region124: #{tpu_custom_call.1} parent=5 // pred_fallthru
        _
    $region6: #{tpu_custom_call.1} parent=1 // loop_footer
      %s40 = sadd.s32 1, %s36
    $region7: #{tpu_custom_call.1} parent=1 // loop_footer_branch
      %35 = sbr.rel target = $region3
    $region8: #{tpu_custom_call.1} parent=1 // loop_exit
      _
    %1969 = vsyncpa [#allocation7], 1
    %s1970 = scalar_lea.sflag [#allocation7], 1
    %1971 = vsyncpa %s1970, 1
    %1972 = vsyncpa [#allocation10], 1
    %s1973 = scalar_lea.sflag [#allocation10], 1
    %1974 = vsyncpa %s1973, 1
    %1975 = vsyncpa [#allocation13], 1
    %s1976 = scalar_lea.sflag [#allocation13], 1
    %1977 = vsyncpa %s1976, 1
    %1978 = vsyncpa [#allocation8], 1
    %s1979 = scalar_lea.sflag [#allocation8], 1
    %1980 = vsyncpa %s1979, 1

</llo_original>
